<compile_context>
chip_gen: v5e
topology: v5e:2x2
jax: 0.10.0
libtpu: 0.0.40
codegen_flags: <defaults>
</compile_context>

<pallas_src>
import functools

import jax
import jax.numpy as jnp
from jax import lax
from jax.experimental import pallas as pl
from jax.experimental.pallas import tpu as pltpu


def _act(name, x):
    if name == "relu":
        return jnp.maximum(x, 0.0)
    if name == "tanh":
        return jnp.tanh(x)
    if name == "sigmoid":
        return jax.nn.sigmoid(x)
    return x  # 'id' / anything else -> no activation (matches the torch module)


def _truncated_power_basis_T(tT, degree, knots):
    """Truncated power basis of t, transposed layout. tT: (1, n) -> list of d arrays (1, n).
    Mirrors Truncated_power.forward exactly (including the degree==1 knot indexing)."""
    num_basis = degree + 1 + len(knots)
    cols = []
    for k in range(num_basis):
        if k <= degree:
            cols.append(jnp.ones_like(tT) if k == 0 else tT ** k)
        elif degree == 1:  # mirrors the original module's indexing exactly
            cols.append(jnp.maximum(tT - knots[k - degree], 0.0))
        else:
            cols.append(jnp.maximum(tT - knots[k - degree - 1], 0.0) ** degree)
    return cols


def vcnet_kernel(*refs, hidden_layers, head_isbias, num_grid, dyn_layers,
                 degree, knots, binary_outcome, mm_dtype):
    g_ref, q_ref = refs[-2], refs[-1]
    in_refs = refs[:-2]
    pos = 0

    def take():
        nonlocal pos
        r = in_refs[pos]
        pos += 1
        return r

    def mm(a, b):  # MXU matmul with f32 accumulation
        return jnp.dot(a.astype(mm_dtype), b.astype(mm_dtype),
                       preferred_element_type=jnp.float32)

    d_basis = degree + 1 + len(knots)

    xT = take()[...]                       # (in_d, tn)   batch on lanes
    tT = take()[...].astype(jnp.float32)   # (1, tn)

    # ---------------- hidden feature MLP (cfg_density) ----------------
    h = xT
    for isbias, act in hidden_layers:
        wT = take()[...]                   # (out_d, in_d)
        z = mm(wT, h)                      # (out_d, tn)
        if isbias:
            z = z + take()[...]            # (out_d, 1) broadcast over lanes
        h = _act(act, z)

    # ------- one combined matmul: [dyn-layer-0 stacked weights ; head weights] @ h -------
    outd0 = dyn_layers[0][2]
    z0_rows = d_basis * outd0
    combo = mm(take()[...], h)             # (d*outd0 + num_grid+1, tn)
    Z = combo[:z0_rows, :]                 # stacked first Dynamic_FC terms (rows grouped by k)
    logits = combo[z0_rows:, :]            # (num_grid+1, tn) Density_Block logits
    if head_isbias:
        logits = logits + take()[...]      # (num_grid+1, 1)

    # ---------------- Density_Block head ----------------
    m = jnp.max(logits, axis=0, keepdims=True)        # (1, tn)
    e = jnp.exp(logits - m)                            # un-normalized softmax
    denom = jnp.sum(e, axis=0, keepdims=True)          # (1, tn)

    # comp_grid
    y = tT * jnp.float32(num_grid)
    U = jnp.ceil(y)
    inter = 1.0 - (U - y)
    L = U - 1.0
    L = L + (L < 0.0).astype(jnp.float32)
    Li = L.astype(jnp.int32)               # (1, tn)
    Ui = U.astype(jnp.int32)

    # per-example gather of grid rows L / U via masked sum over the (small) grid axis
    row = lax.broadcasted_iota(jnp.int32, e.shape, 0)   # (num_grid+1, tn)
    L_e = jnp.sum(jnp.where(row == Li, e, 0.0), axis=0, keepdims=True)
    U_e = jnp.sum(jnp.where(row == Ui, e, 0.0), axis=0, keepdims=True)
    # one divide per example on EUP (approx vrcp) + one Newton step -> effectively exact
    r = pl.reciprocal(denom, approx=True)
    r = r * (2.0 - denom * r)
    g_ref[...] = (L_e + (U_e - L_e) * inter) * r        # (1, tn) lane-dense

    # ---------------- Dynamic_FC stack (Q head) ----------------
    basis = _truncated_power_basis_T(tT, degree, knots)  # d arrays of (1, tn); basis[0] == 1
    feat = h
    for li, (isbias, act, outd) in enumerate(dyn_layers):
        if li > 0:
            Z = mm(take()[...], feat)       # (d*outd, tn): ONE MXU push, feat cast once here
        if isbias:
            Z = Z + take()[...]             # (d*outd, 1) stacked bias; bias_k scaled by basis_k
        acc = Z[0:outd, :]                  # k = 0 term: basis[0] == 1, skip the multiply
        for k in range(1, d_basis):
            acc = acc + Z[k * outd:(k + 1) * outd, :] * basis[k]
        feat = _act(act, acc)
    if binary_outcome:
        feat = jax.nn.sigmoid(feat)
    q_ref[...] = feat                       # (q_outd, tn) lane-dense

    assert pos == len(in_refs), "kernel consumed wrong number of operands"


def _round_up(n, m):
    return -(-n // m) * m


def _auto_tile(n, max_tn=2048):
    """Lane-dense batch tile.  grid=1 whenever the whole (128-padded) batch fits in one tile
    (the grid is a serial loop on single-TC chips); for larger batches split near-equally into
    multiples of 128 so padding stays minimal."""
    n128 = _round_up(max(n, 1), 128)
    if n128 <= max_tn:
        return int(n128)
    steps = -(-n128 // max_tn)
    return int(_round_up(-(-n128 // steps), 128))


def vcnet_forward(x, t, params, *, num_grid, degree, knots, binary_outcome=False,
                  tn=None, max_tn=2048, compute_dtype=jnp.float32):
    """Fused VCNet forward.  Returns (g, Q): g (N,), Q (N, q_outd).

    params = {
      "hidden": [(W (in,out), b (out,) | None, act), ...],        # cfg_density Linear stack
      "head":   (W (hid, num_grid+1), b (num_grid+1,) | None),    # Density_Block
      "dyn":    [(W (ind,outd,d), b (outd,d) | None, act), ...],  # Dynamic_FC stack (cfg)
    }
    """
    f32 = jnp.float32
    N, in_d = x.shape
    assert len(params["dyn"]) >= 1
    if tn is None:
        tn = _auto_tile(N, max_tn)
    assert tn % 128 == 0, "tn must be a multiple of 128 (lane-dense tiles)"
    n_pad = _round_up(N, tn)
    d_basis = degree + 1 + len(knots)

    # TODO(synk): x is transposed on the host side before the kernel; for huge N feed x already
    # transposed to avoid the extra HBM pass (negligible at in_d=6).
    xT = jnp.pad(x.astype(f32), ((0, n_pad - N), (0, 0))).T.astype(compute_dtype)
    tT = jnp.pad(t.astype(f32), (0, n_pad - N)).reshape(1, n_pad)

    operands = [xT, tT]
    in_specs = [pl.BlockSpec((in_d, tn), lambda i: (0, i)),
                pl.BlockSpec((1, tn), lambda i: (0, i))]

    def add_resident(arr):  # full-array block, kept resident in VMEM across the grid
        operands.append(arr)
        in_specs.append(pl.BlockSpec(arr.shape, lambda i, nd=arr.ndim: (0,) * nd))

    hidden_cfg = []
    for W, b, act in params["hidden"]:
        add_resident(jnp.asarray(W, f32).T.astype(compute_dtype))
        if b is not None:
            add_resident(jnp.asarray(b, f32).reshape(-1, 1))
        hidden_cfg.append((b is not None, act))

    # Stack each Dynamic_FC weight (ind, outd, d) -> (d*outd, ind) (rows grouped by basis index k)
    # and each bias (outd, d) -> (d*outd, 1) aligned with those rows.
    dyn_cfg, dyn_Wstk, dyn_bstk = [], [], []
    for W3, b2, act in params["dyn"]:
        ind, outd, dd = W3.shape
        assert dd == d_basis
        dyn_Wstk.append(jnp.transpose(jnp.asarray(W3, f32), (2, 1, 0))
                        .reshape(d_basis * outd, ind).astype(compute_dtype))
        dyn_bstk.append(None if b2 is None else
                        jnp.transpose(jnp.asarray(b2, f32), (1, 0)).reshape(d_basis * outd, 1))
        dyn_cfg.append((b2 is not None, act, outd))

    # Density_Block head weight is stacked under the first dyn layer's weight -> one matmul on h.
    Wg, bg = params["head"]
    assert Wg.shape[1] == num_grid + 1
    w_combo = jnp.concatenate(
        [dyn_Wstk[0], jnp.asarray(Wg, f32).T.astype(compute_dtype)], axis=0)
    add_resident(w_combo)
    head_isbias = bg is not None
    if head_isbias:
        add_resident(jnp.asarray(bg, f32).reshape(-1, 1))
    if dyn_bstk[0] is not None:
        add_resident(dyn_bstk[0])
    for li in range(1, len(params["dyn"])):
        add_resident(dyn_Wstk[li])
        if dyn_bstk[li] is not None:
            add_resident(dyn_bstk[li])
    q_outd = dyn_cfg[-1][2]

    kernel = functools.partial(
        vcnet_kernel,
        hidden_layers=tuple(hidden_cfg),
        head_isbias=head_isbias,
        num_grid=num_grid,
        dyn_layers=tuple(dyn_cfg),
        degree=degree,
        knots=tuple(float(kn) for kn in knots),
        binary_outcome=binary_outcome,
        mm_dtype=compute_dtype,
    )

    g_pad, q_pad = pl.pallas_call(
        kernel,
        out_shape=(jax.ShapeDtypeStruct((1, n_pad), f32),
                   jax.ShapeDtypeStruct((q_outd, n_pad), f32)),
        grid_spec=pltpu.PrefetchScalarGridSpec(
            num_scalar_prefetch=0,
            grid=(n_pad // tn,),
            in_specs=in_specs,
            out_specs=(pl.BlockSpec((1, tn), lambda i: (0, i)),
                       pl.BlockSpec((q_outd, tn), lambda i: (0, i))),
        ),
        compiler_params=pltpu.CompilerParams(dimension_semantics=("parallel",)),
    )(*operands)

    return g_pad[0, :N], q_pad[:, :N].T


def vcnet_ref(x, t, params, *, num_grid, degree, knots, binary_outcome=False,
              mm_dtype=jnp.float32):
    """Pure-JAX reference mirroring the PyTorch VCNet_module.forward."""
    f32 = jnp.float32
    hi = jax.lax.Precision.HIGHEST

    def mm(a, b):
        return jnp.dot(a.astype(mm_dtype), b.astype(mm_dtype),
                       preferred_element_type=f32, precision=hi)

    h = x.astype(f32)
    for W, b, act in params["hidden"]:
        z = mm(h, jnp.asarray(W, f32))
        if b is not None:
            z = z + jnp.asarray(b, f32)
        h = _act(act, z)

    Wg, bg = params["head"]
    logits = mm(h, jnp.asarray(Wg, f32))
    if bg is not None:
        logits = logits + jnp.asarray(bg, f32)
    p = jax.nn.softmax(logits, axis=1)
    tt = t.astype(f32)
    y = tt * num_grid
    U = jnp.ceil(y)
    inter = 1.0 - (U - y)
    L = U - 1.0
    L = L + (L < 0).astype(f32)
    rows = jnp.arange(x.shape[0])
    L_out = p[rows, L.astype(jnp.int32)]
    U_out = p[rows, U.astype(jnp.int32)]
    g = L_out + (U_out - L_out) * inter

    cols = _truncated_power_basis_T(tt.reshape(1, -1), degree, knots)
    basis = jnp.concatenate([c.reshape(-1, 1) for c in cols], axis=1)   # (N, d)
    feat = h
    for W3, b2, act in params["dyn"]:
        xfw = jnp.einsum("ni,iok->nok", feat.astype(mm_dtype),
                         jnp.asarray(W3, f32).astype(mm_dtype),
                         preferred_element_type=f32, precision=hi)
        out = jnp.sum(xfw * basis[:, None, :], axis=2)
        if b2 is not None:
            out = out + jnp.dot(basis, jnp.asarray(b2, f32).T, precision=hi)
        feat = _act(act, out)
    Q = jax.nn.sigmoid(feat) if binary_outcome else feat
    return g, Q


if __name__ == "__main__":
    # Small config consistent with the module:
    #   cfg_density = [(6, 32, 1, 'relu'), (32, 32, 1, 'relu')], num_grid = 10,
    #   cfg = [(32, 32, 1, 'relu'), (32, 1, 1, 'id')], degree = 2, knots = (0.33, 0.66)
    N, in_d, hid = 600, 6, 32
    num_grid = 10
    degree = 2
    knots = (0.33, 0.66)
    d = degree + 1 + len(knots)
    binary_outcome = False

    key = jax.random.PRNGKey(0)
    ks = jax.random.split(key, 12)
    x = jax.random.normal(ks[0], (N, in_d), dtype=jnp.float32)
    t = jax.random.uniform(ks[1], (N,), dtype=jnp.float32)   # treatment bounded in [0, 1]

    params = {
        "hidden": [
            (0.1 * jax.random.normal(ks[2], (in_d, hid)),
             0.1 * jax.random.normal(ks[3], (hid,)), "relu"),
            (0.1 * jax.random.normal(ks[4], (hid, hid)),
             0.1 * jax.random.normal(ks[5], (hid,)), "relu"),
        ],
        "head": (0.2 * jax.random.normal(ks[6], (hid, num_grid + 1)),
                 jax.random.uniform(ks[7], (num_grid + 1,))),
        "dyn": [
            (0.3 * jax.random.normal(ks[8], (hid, hid, d)),
             0.1 * jax.random.normal(ks[9], (hid, d)), "relu"),
            (0.3 * jax.random.normal(ks[10], (hid, 1, d)),
             0.1 * jax.random.normal(ks[11], (1, d)), "id"),
        ],
    }

    common = dict(num_grid=num_grid, degree=degree, knots=knots,
                  binary_outcome=binary_outcome)

    # float32 path (N=600 -> tn=640, grid=1, 4 MXU pushes per step)
    g, Q = vcnet_forward(x, t, params, **common)
    g, Q = jax.block_until_ready((g, Q))
    g_ref, Q_ref = vcnet_ref(x, t, params, **common)
    assert g.shape == (N,) and Q.shape == (N, 1), (g.shape, Q.shape)
    # tolerance covers possible f32-vs-multipass-bf16 MXU matmul differences
    assert jnp.allclose(g, g_ref, atol=2e-3, rtol=2e-3), float(jnp.max(jnp.abs(g - g_ref)))
    assert jnp.allclose(Q, Q_ref, atol=2e-3, rtol=2e-3), float(jnp.max(jnp.abs(Q - Q_ref)))

    # bfloat16 fast path (halved HBM traffic for x / weights), checked vs a bf16-matched reference
    g_b, Q_b = vcnet_forward(x, t, params, compute_dtype=jnp.bfloat16, **common)
    g_b, Q_b = jax.block_until_ready((g_b, Q_b))
    g_rb, Q_rb = vcnet_ref(x, t, params, mm_dtype=jnp.bfloat16, **common)
    assert jnp.allclose(g_b, g_rb, atol=5e-3, rtol=5e-2), float(jnp.max(jnp.abs(g_b - g_rb)))
    assert jnp.allclose(Q_b, Q_rb, atol=5e-3, rtol=5e-2), float(jnp.max(jnp.abs(Q_b - Q_rb)))

    print("KERNEL_OK")
</pallas_src>

<mosaic_0001>
module attributes {stable_mosaic.version = 11 : i64} {
  func.func @vcnet_kernel(%arg0: i32, %arg1: memref<6x640xf32, #tpu.memory_space<vmem>>, %arg2: memref<1x640xf32, #tpu.memory_space<vmem>>, %arg3: memref<32x6xf32, #tpu.memory_space<vmem>>, %arg4: memref<32x1xf32, #tpu.memory_space<vmem>>, %arg5: memref<32x32xf32, #tpu.memory_space<vmem>>, %arg6: memref<32x1xf32, #tpu.memory_space<vmem>>, %arg7: memref<171x32xf32, #tpu.memory_space<vmem>>, %arg8: memref<11x1xf32, #tpu.memory_space<vmem>>, %arg9: memref<160x1xf32, #tpu.memory_space<vmem>>, %arg10: memref<5x32xf32, #tpu.memory_space<vmem>>, %arg11: memref<5x1xf32, #tpu.memory_space<vmem>>, %arg12: memref<1x640xf32, #tpu.memory_space<vmem>>, %arg13: memref<1x640xf32, #tpu.memory_space<vmem>>) attributes {dimension_semantics = [#tpu.dimension_semantics<parallel>], iteration_bounds = array<i64: 1>, scalar_prefetch = 0 : i64, scratch_operands = 0 : i64, tpu.core_type = #tpu.core_type<tc>, window_params = [{transform_indices = @transform_0, window_bounds = array<i64: 6, 640>}, {transform_indices = @transform_1, window_bounds = array<i64: 1, 640>}, {pipeline_mode = #tpu.pipeline_mode<synchronous>, transform_indices = @transform_2, window_bounds = array<i64: 32, 6>}, {pipeline_mode = #tpu.pipeline_mode<synchronous>, transform_indices = @transform_3, window_bounds = array<i64: 32, 1>}, {pipeline_mode = #tpu.pipeline_mode<synchronous>, transform_indices = @transform_4, window_bounds = array<i64: 32, 32>}, {pipeline_mode = #tpu.pipeline_mode<synchronous>, transform_indices = @transform_5, window_bounds = array<i64: 32, 1>}, {pipeline_mode = #tpu.pipeline_mode<synchronous>, transform_indices = @transform_6, window_bounds = array<i64: 171, 32>}, {pipeline_mode = #tpu.pipeline_mode<synchronous>, transform_indices = @transform_7, window_bounds = array<i64: 11, 1>}, {pipeline_mode = #tpu.pipeline_mode<synchronous>, transform_indices = @transform_8, window_bounds = array<i64: 160, 1>}, {pipeline_mode = #tpu.pipeline_mode<synchronous>, transform_indices = @transform_9, window_bounds = array<i64: 5, 32>}, {pipeline_mode = #tpu.pipeline_mode<synchronous>, transform_indices = @transform_10, window_bounds = array<i64: 5, 1>}, {transform_indices = @transform_11, window_bounds = array<i64: 1, 640>}, {transform_indices = @transform_12, window_bounds = array<i64: 1, 640>}]} {
    %c0 = arith.constant 0 : index
    %c0_0 = arith.constant 0 : index
    %0 = vector.load %arg1[%c0, %c0_0] : memref<6x640xf32, #tpu.memory_space<vmem>>, vector<6x640xf32>
    %c0_1 = arith.constant 0 : index
    %c0_2 = arith.constant 0 : index
    %1 = vector.load %arg2[%c0_1, %c0_2] : memref<1x640xf32, #tpu.memory_space<vmem>>, vector<1x640xf32>
    %c0_3 = arith.constant 0 : index
    %c0_4 = arith.constant 0 : index
    %2 = vector.load %arg3[%c0_3, %c0_4] : memref<32x6xf32, #tpu.memory_space<vmem>>, vector<32x6xf32>
    %cst = arith.constant dense<0.000000e+00> : vector<32x640xf32>
    %3 = tpu.matmul %2, %0, %cst {dimension_numbers = #tpu.dot_dimension_numbers<[1], [0], [0], [1], [0, 0, 1, 1], [], []>} : vector<32x6xf32>, vector<6x640xf32>, vector<32x640xf32> -> vector<32x640xf32>
    %c0_5 = arith.constant 0 : index
    %c0_6 = arith.constant 0 : index
    %4 = vector.load %arg4[%c0_5, %c0_6] : memref<32x1xf32, #tpu.memory_space<vmem>>, vector<32x1xf32>
    %5 = vector.broadcast %4 : vector<32x1xf32> to vector<32x640xf32>
    %6 = arith.addf %3, %5 : vector<32x640xf32>
    %cst_7 = arith.constant 0.000000e+00 : f32
    %7 = vector.broadcast %cst_7 : f32 to vector<32x640xf32>
    %8 = arith.maximumf %6, %7 : vector<32x640xf32>
    %c0_8 = arith.constant 0 : index
    %c0_9 = arith.constant 0 : index
    %9 = vector.load %arg5[%c0_8, %c0_9] : memref<32x32xf32, #tpu.memory_space<vmem>>, vector<32x32xf32>
    %cst_10 = arith.constant dense<0.000000e+00> : vector<32x640xf32>
    %10 = tpu.matmul %9, %8, %cst_10 {dimension_numbers = #tpu.dot_dimension_numbers<[1], [0], [0], [1], [0, 0, 1, 1], [], []>} : vector<32x32xf32>, vector<32x640xf32>, vector<32x640xf32> -> vector<32x640xf32>
    %c0_11 = arith.constant 0 : index
    %c0_12 = arith.constant 0 : index
    %11 = vector.load %arg6[%c0_11, %c0_12] : memref<32x1xf32, #tpu.memory_space<vmem>>, vector<32x1xf32>
    %12 = vector.broadcast %11 : vector<32x1xf32> to vector<32x640xf32>
    %13 = arith.addf %10, %12 : vector<32x640xf32>
    %cst_13 = arith.constant 0.000000e+00 : f32
    %14 = vector.broadcast %cst_13 : f32 to vector<32x640xf32>
    %15 = arith.maximumf %13, %14 : vector<32x640xf32>
    %c0_14 = arith.constant 0 : index
    %c0_15 = arith.constant 0 : index
    %16 = vector.load %arg7[%c0_14, %c0_15] : memref<171x32xf32, #tpu.memory_space<vmem>>, vector<171x32xf32>
    %cst_16 = arith.constant dense<0.000000e+00> : vector<171x640xf32>
    %17 = tpu.matmul %16, %15, %cst_16 {dimension_numbers = #tpu.dot_dimension_numbers<[1], [0], [0], [1], [0, 0, 1, 1], [], []>} : vector<171x32xf32>, vector<32x640xf32>, vector<171x640xf32> -> vector<171x640xf32>
    %18 = vector.extract_strided_slice %17 {offsets = [0, 0], sizes = [160, 640], strides = [1, 1]} : vector<171x640xf32> to vector<160x640xf32>
    %19 = vector.extract_strided_slice %17 {offsets = [160, 0], sizes = [11, 640], strides = [1, 1]} : vector<171x640xf32> to vector<11x640xf32>
    %c0_17 = arith.constant 0 : index
    %c0_18 = arith.constant 0 : index
    %20 = vector.load %arg8[%c0_17, %c0_18] : memref<11x1xf32, #tpu.memory_space<vmem>>, vector<11x1xf32>
    %21 = vector.broadcast %20 : vector<11x1xf32> to vector<11x640xf32>
    %22 = arith.addf %19, %21 : vector<11x640xf32>
    %cst_19 = arith.constant dense<0xFF800000> : vector<640xf32>
    %23 = vector.multi_reduction <maximumf>, %22, %cst_19 [0] : vector<11x640xf32> to vector<640xf32>
    %24 = vector.shape_cast %23 : vector<640xf32> to vector<1x640xf32>
    %25 = vector.broadcast %24 : vector<1x640xf32> to vector<11x640xf32>
    %26 = arith.subf %22, %25 : vector<11x640xf32>
    %27 = math.exp %26 : vector<11x640xf32>
    %cst_20 = arith.constant dense<0.000000e+00> : vector<640xf32>
    %28 = vector.multi_reduction <add>, %27, %cst_20 [0] : vector<11x640xf32> to vector<640xf32>
    %29 = vector.shape_cast %28 : vector<640xf32> to vector<1x640xf32>
    %cst_21 = arith.constant 1.000000e+01 : f32
    %30 = vector.broadcast %cst_21 : f32 to vector<1x640xf32>
    %31 = arith.mulf %1, %30 : vector<1x640xf32>
    %32 = math.ceil %31 : vector<1x640xf32>
    %33 = arith.subf %32, %31 : vector<1x640xf32>
    %cst_22 = arith.constant 1.000000e+00 : f32
    %34 = vector.broadcast %cst_22 : f32 to vector<1x640xf32>
    %35 = arith.subf %34, %33 : vector<1x640xf32>
    %cst_23 = arith.constant 1.000000e+00 : f32
    %36 = vector.broadcast %cst_23 : f32 to vector<1x640xf32>
    %37 = arith.subf %32, %36 : vector<1x640xf32>
    %cst_24 = arith.constant 0.000000e+00 : f32
    %38 = vector.broadcast %cst_24 : f32 to vector<1x640xf32>
    %39 = arith.cmpf olt, %37, %38 : vector<1x640xf32>
    %40 = arith.extui %39 : vector<1x640xi1> to vector<1x640xi32>
    %41 = arith.sitofp %40 : vector<1x640xi32> to vector<1x640xf32>
    %42 = arith.addf %37, %41 : vector<1x640xf32>
    %43 = arith.fptosi %42 : vector<1x640xf32> to vector<1x640xi32>
    %44 = arith.fptosi %32 : vector<1x640xf32> to vector<1x640xi32>
    %45 = tpu.iota {dimensions = array<i32: 0>} : vector<11x640xi32>
    %46 = vector.broadcast %43 : vector<1x640xi32> to vector<11x640xi32>
    %47 = arith.cmpi eq, %45, %46 : vector<11x640xi32>
    %cst_25 = arith.constant 0.000000e+00 : f32
    %48 = vector.broadcast %cst_25 : f32 to vector<11x640xf32>
    %49 = arith.select %47, %27, %48 : vector<11x640xi1>, vector<11x640xf32>
    %cst_26 = arith.constant dense<0.000000e+00> : vector<640xf32>
    %50 = vector.multi_reduction <add>, %49, %cst_26 [0] : vector<11x640xf32> to vector<640xf32>
    %51 = vector.shape_cast %50 : vector<640xf32> to vector<1x640xf32>
    %52 = vector.broadcast %44 : vector<1x640xi32> to vector<11x640xi32>
    %53 = arith.cmpi eq, %45, %52 : vector<11x640xi32>
    %cst_27 = arith.constant 0.000000e+00 : f32
    %54 = vector.broadcast %cst_27 : f32 to vector<11x640xf32>
    %55 = arith.select %53, %27, %54 : vector<11x640xi1>, vector<11x640xf32>
    %cst_28 = arith.constant dense<0.000000e+00> : vector<640xf32>
    %56 = vector.multi_reduction <add>, %55, %cst_28 [0] : vector<11x640xf32> to vector<640xf32>
    %57 = vector.shape_cast %56 : vector<640xf32> to vector<1x640xf32>
    %58 = tpu.reciprocal %29 {approx = true} : vector<1x640xf32> -> vector<1x640xf32>
    %59 = arith.mulf %29, %58 : vector<1x640xf32>
    %cst_29 = arith.constant 2.000000e+00 : f32
    %60 = vector.broadcast %cst_29 : f32 to vector<1x640xf32>
    %61 = arith.subf %60, %59 : vector<1x640xf32>
    %62 = arith.mulf %58, %61 : vector<1x640xf32>
    %63 = arith.subf %57, %51 : vector<1x640xf32>
    %64 = arith.mulf %63, %35 : vector<1x640xf32>
    %65 = arith.addf %51, %64 : vector<1x640xf32>
    %66 = arith.mulf %65, %62 : vector<1x640xf32>
    %c0_30 = arith.constant 0 : index
    %c0_31 = arith.constant 0 : index
    %67 = vector.load %arg12[%c0_30, %c0_31] : memref<1x640xf32, #tpu.memory_space<vmem>>, vector<1x640xf32>
    tpu.vector_store %arg12[%c0_30, %c0_31], %66 {strides = array<i32>} : memref<1x640xf32, #tpu.memory_space<vmem>>, vector<1x640xf32>,
    %68 = arith.mulf %1, %1 : vector<1x640xf32>
    %cst_32 = arith.constant 3.300000e-01 : f32
    %69 = vector.broadcast %cst_32 : f32 to vector<1x640xf32>
    %70 = arith.subf %1, %69 : vector<1x640xf32>
    %cst_33 = arith.constant 0.000000e+00 : f32
    %71 = vector.broadcast %cst_33 : f32 to vector<1x640xf32>
    %72 = arith.maximumf %70, %71 : vector<1x640xf32>
    %73 = arith.mulf %72, %72 : vector<1x640xf32>
    %cst_34 = arith.constant 6.600000e-01 : f32
    %74 = vector.broadcast %cst_34 : f32 to vector<1x640xf32>
    %75 = arith.subf %1, %74 : vector<1x640xf32>
    %cst_35 = arith.constant 0.000000e+00 : f32
    %76 = vector.broadcast %cst_35 : f32 to vector<1x640xf32>
    %77 = arith.maximumf %75, %76 : vector<1x640xf32>
    %78 = arith.mulf %77, %77 : vector<1x640xf32>
    %c0_36 = arith.constant 0 : index
    %c0_37 = arith.constant 0 : index
    %79 = vector.load %arg9[%c0_36, %c0_37] : memref<160x1xf32, #tpu.memory_space<vmem>>, vector<160x1xf32>
    %80 = vector.broadcast %79 : vector<160x1xf32> to vector<160x640xf32>
    %81 = arith.addf %18, %80 : vector<160x640xf32>
    %82 = vector.extract_strided_slice %81 {offsets = [0, 0], sizes = [32, 640], strides = [1, 1]} : vector<160x640xf32> to vector<32x640xf32>
    %83 = vector.extract_strided_slice %81 {offsets = [32, 0], sizes = [32, 640], strides = [1, 1]} : vector<160x640xf32> to vector<32x640xf32>
    %84 = vector.broadcast %1 : vector<1x640xf32> to vector<32x640xf32>
    %85 = arith.mulf %83, %84 : vector<32x640xf32>
    %86 = arith.addf %82, %85 : vector<32x640xf32>
    %87 = vector.extract_strided_slice %81 {offsets = [64, 0], sizes = [32, 640], strides = [1, 1]} : vector<160x640xf32> to vector<32x640xf32>
    %88 = vector.broadcast %68 : vector<1x640xf32> to vector<32x640xf32>
    %89 = arith.mulf %87, %88 : vector<32x640xf32>
    %90 = arith.addf %86, %89 : vector<32x640xf32>
    %91 = vector.extract_strided_slice %81 {offsets = [96, 0], sizes = [32, 640], strides = [1, 1]} : vector<160x640xf32> to vector<32x640xf32>
    %92 = vector.broadcast %73 : vector<1x640xf32> to vector<32x640xf32>
    %93 = arith.mulf %91, %92 : vector<32x640xf32>
    %94 = arith.addf %90, %93 : vector<32x640xf32>
    %95 = vector.extract_strided_slice %81 {offsets = [128, 0], sizes = [32, 640], strides = [1, 1]} : vector<160x640xf32> to vector<32x640xf32>
    %96 = vector.broadcast %78 : vector<1x640xf32> to vector<32x640xf32>
    %97 = arith.mulf %95, %96 : vector<32x640xf32>
    %98 = arith.addf %94, %97 : vector<32x640xf32>
    %cst_38 = arith.constant 0.000000e+00 : f32
    %99 = vector.broadcast %cst_38 : f32 to vector<32x640xf32>
    %100 = arith.maximumf %98, %99 : vector<32x640xf32>
    %c0_39 = arith.constant 0 : index
    %c0_40 = arith.constant 0 : index
    %101 = vector.load %arg10[%c0_39, %c0_40] : memref<5x32xf32, #tpu.memory_space<vmem>>, vector<5x32xf32>
    %cst_41 = arith.constant dense<0.000000e+00> : vector<5x640xf32>
    %102 = tpu.matmul %101, %100, %cst_41 {dimension_numbers = #tpu.dot_dimension_numbers<[1], [0], [0], [1], [0, 0, 1, 1], [], []>} : vector<5x32xf32>, vector<32x640xf32>, vector<5x640xf32> -> vector<5x640xf32>
    %c0_42 = arith.constant 0 : index
    %c0_43 = arith.constant 0 : index
    %103 = vector.load %arg11[%c0_42, %c0_43] : memref<5x1xf32, #tpu.memory_space<vmem>>, vector<5x1xf32>
    %104 = vector.broadcast %103 : vector<5x1xf32> to vector<5x640xf32>
    %105 = arith.addf %102, %104 : vector<5x640xf32>
    %106 = vector.extract_strided_slice %105 {offsets = [0, 0], sizes = [1, 640], strides = [1, 1]} : vector<5x640xf32> to vector<1x640xf32>
    %107 = vector.extract_strided_slice %105 {offsets = [1, 0], sizes = [1, 640], strides = [1, 1]} : vector<5x640xf32> to vector<1x640xf32>
    %108 = arith.mulf %107, %1 : vector<1x640xf32>
    %109 = arith.addf %106, %108 : vector<1x640xf32>
    %110 = vector.extract_strided_slice %105 {offsets = [2, 0], sizes = [1, 640], strides = [1, 1]} : vector<5x640xf32> to vector<1x640xf32>
    %111 = arith.mulf %110, %68 : vector<1x640xf32>
    %112 = arith.addf %109, %111 : vector<1x640xf32>
    %113 = vector.extract_strided_slice %105 {offsets = [3, 0], sizes = [1, 640], strides = [1, 1]} : vector<5x640xf32> to vector<1x640xf32>
    %114 = arith.mulf %113, %73 : vector<1x640xf32>
    %115 = arith.addf %112, %114 : vector<1x640xf32>
    %116 = vector.extract_strided_slice %105 {offsets = [4, 0], sizes = [1, 640], strides = [1, 1]} : vector<5x640xf32> to vector<1x640xf32>
    %117 = arith.mulf %116, %78 : vector<1x640xf32>
    %118 = arith.addf %115, %117 : vector<1x640xf32>
    %c0_44 = arith.constant 0 : index
    %c0_45 = arith.constant 0 : index
    %119 = vector.load %arg13[%c0_44, %c0_45] : memref<1x640xf32, #tpu.memory_space<vmem>>, vector<1x640xf32>
    tpu.vector_store %arg13[%c0_44, %c0_45], %118 {strides = array<i32>} : memref<1x640xf32, #tpu.memory_space<vmem>>, vector<1x640xf32>,
    return
  }
  func.func @transform_0(%arg0: i32) -> (i32, i32) {
    %c0_i32 = arith.constant 0 : i32
    %c0_i32_0 = arith.constant 0 : i32
    return %c0_i32, %arg0 : i32, i32
  }
  func.func @transform_1(%arg0: i32) -> (i32, i32) {
    %c0_i32 = arith.constant 0 : i32
    %c0_i32_0 = arith.constant 0 : i32
    return %c0_i32, %arg0 : i32, i32
  }
  func.func @transform_2(%arg0: i32) -> (i32, i32) {
    %c0_i32 = arith.constant 0 : i32
    %c0_i32_0 = arith.constant 0 : i32
    %c0_i32_1 = arith.constant 0 : i32
    return %c0_i32, %c0_i32_0 : i32, i32
  }
  func.func @transform_3(%arg0: i32) -> (i32, i32) {
    %c0_i32 = arith.constant 0 : i32
    %c0_i32_0 = arith.constant 0 : i32
    %c0_i32_1 = arith.constant 0 : i32
    return %c0_i32, %c0_i32_0 : i32, i32
  }
  func.func @transform_4(%arg0: i32) -> (i32, i32) {
    %c0_i32 = arith.constant 0 : i32
    %c0_i32_0 = arith.constant 0 : i32
    %c0_i32_1 = arith.constant 0 : i32
    return %c0_i32, %c0_i32_0 : i32, i32
  }
  func.func @transform_5(%arg0: i32) -> (i32, i32) {
    %c0_i32 = arith.constant 0 : i32
    %c0_i32_0 = arith.constant 0 : i32
    %c0_i32_1 = arith.constant 0 : i32
    return %c0_i32, %c0_i32_0 : i32, i32
  }
  func.func @transform_6(%arg0: i32) -> (i32, i32) {
    %c0_i32 = arith.constant 0 : i32
    %c0_i32_0 = arith.constant 0 : i32
    %c0_i32_1 = arith.constant 0 : i32
    return %c0_i32, %c0_i32_0 : i32, i32
  }
  func.func @transform_7(%arg0: i32) -> (i32, i32) {
    %c0_i32 = arith.constant 0 : i32
    %c0_i32_0 = arith.constant 0 : i32
    %c0_i32_1 = arith.constant 0 : i32
    return %c0_i32, %c0_i32_0 : i32, i32
  }
  func.func @transform_8(%arg0: i32) -> (i32, i32) {
    %c0_i32 = arith.constant 0 : i32
    %c0_i32_0 = arith.constant 0 : i32
    %c0_i32_1 = arith.constant 0 : i32
    return %c0_i32, %c0_i32_0 : i32, i32
  }
  func.func @transform_9(%arg0: i32) -> (i32, i32) {
    %c0_i32 = arith.constant 0 : i32
    %c0_i32_0 = arith.constant 0 : i32
    %c0_i32_1 = arith.constant 0 : i32
    return %c0_i32, %c0_i32_0 : i32, i32
  }
  func.func @transform_10(%arg0: i32) -> (i32, i32) {
    %c0_i32 = arith.constant 0 : i32
    %c0_i32_0 = arith.constant 0 : i32
    %c0_i32_1 = arith.constant 0 : i32
    return %c0_i32, %c0_i32_0 : i32, i32
  }
  func.func @transform_11(%arg0: i32) -> (i32, i32) {
    %c0_i32 = arith.constant 0 : i32
    %c0_i32_0 = arith.constant 0 : i32
    return %c0_i32, %arg0 : i32, i32
  }
  func.func @transform_12(%arg0: i32) -> (i32, i32) {
    %c0_i32 = arith.constant 0 : i32
    %c0_i32_0 = arith.constant 0 : i32
    return %c0_i32, %arg0 : i32, i32
  }
}

</mosaic_0001>

<llo_original>
// kernel: tpu_custom_call.1
$region0: #{tpu_custom_call.1}
  #allocation0 [shape = 'u32[]', space=smem, size = 0x4, offset = 0x4, fixed_abs, tag = 'smem constant byte address 0x4 - core index']
  #allocation1 [shape = 'u32[72,128]{1,0:T(1,128)}', space=vmem, size = 0x9000, scoped, tag = 'internal scratch']
  %s0 = inlined_call_operand.vmem [shape: f32[6,640], index: 0, kind: input, shape index: {}]
  %s1 = inlined_call_operand.vmem [shape: f32[1,640], index: 1, kind: input, shape index: {}]
  %s2 = inlined_call_operand.vmem [shape: f32[32,6], index: 2, kind: input, shape index: {}]
  %s3 = inlined_call_operand.vmem [shape: f32[32,1], index: 3, kind: input, shape index: {}]
  %s4 = inlined_call_operand.vmem [shape: f32[32,32], index: 4, kind: input, shape index: {}]
  %s5 = inlined_call_operand.vmem [shape: f32[32,1], index: 5, kind: input, shape index: {}]
  %s6 = inlined_call_operand.vmem [shape: f32[171,32], index: 6, kind: input, shape index: {}]
  %s7 = inlined_call_operand.vmem [shape: f32[11,1], index: 7, kind: input, shape index: {}]
  %s8 = inlined_call_operand.vmem [shape: f32[160,1], index: 8, kind: input, shape index: {}]
  %s9 = inlined_call_operand.vmem [shape: f32[5,32], index: 9, kind: input, shape index: {}]
  %s10 = inlined_call_operand.vmem [shape: f32[5,1], index: 10, kind: input, shape index: {}]
  %s11 = inlined_call_operand.hbm [shape: f32[1,640], index: 11, kind: output, shape index: {0}]
  %s12 = inlined_call_operand.hbm [shape: f32[1,640], index: 12, kind: output, shape index: {1}]
  %13 = xla_tuple %s11, %s12
  %s14 = sld [smem:[#allocation0]]
  $region62: #{tpu_custom_call.1} parent=0
    _
  %s16 = ssub.s32 1, %s14
  %s17 = scalar_select 0, %s16, %s14
  $region1: #{tpu_custom_call.1} parent=0
    #allocation2 [shape = 'u8[2560]{0}', space=vmem, size = 0xc00, scoped, tag = 'output window, operand 0, single buffered']
    #allocation3 [shape = 's32[1]{0}', space=sflag, size = 0x4, scoped, tag = 'scoped memory for tpu_custom_call.1']
    #allocation4 [shape = 'u8[2560]{0}', space=vmem, size = 0xc00, scoped, tag = 'output window, operand 1, single buffered']
    #allocation5 [shape = 's32[1]{0}', space=sflag, size = 0x4, scoped, tag = 'scoped memory for tpu_custom_call.1']
    %18 = vsyncpa [#allocation3], 0
    %19 = vsyncpa [#allocation5], 0
    // Predicated region
    $region2: #{tpu_custom_call.1} parent=1 // pred_check
      _
    $region3: #{tpu_custom_call.1} parent=1 // pred_check_branch
      %21 = sbr.rel (0) target = $region5
    $region4: #{tpu_custom_call.1} parent=1 // pred_region
      _
    $region5: #{tpu_custom_call.1} parent=1 // pred_fallthru
      _
    // Predicated region
    $region6: #{tpu_custom_call.1} parent=1 // pred_check
      _
    $region7: #{tpu_custom_call.1} parent=1 // pred_check_branch
      %23 = sbr.rel (0) target = $region9
    $region8: #{tpu_custom_call.1} parent=1 // pred_region
      _
    $region9: #{tpu_custom_call.1} parent=1 // pred_fallthru
      _
    // Predicated region
    $region10: #{tpu_custom_call.1} parent=1 // pred_check
      _
    $region11: #{tpu_custom_call.1} parent=1 // pred_check_branch
      %25 = sbr.rel (0) target = $region13
    $region12: #{tpu_custom_call.1} parent=1 // pred_region
      _
    $region13: #{tpu_custom_call.1} parent=1 // pred_fallthru
      _
    // Predicated region
    $region14: #{tpu_custom_call.1} parent=1 // pred_check
      _
    $region15: #{tpu_custom_call.1} parent=1 // pred_check_branch
      %27 = sbr.rel (0) target = $region17
    $region16: #{tpu_custom_call.1} parent=1 // pred_region
      _
    $region17: #{tpu_custom_call.1} parent=1 // pred_fallthru
      _
    // Predicated region
    $region18: #{tpu_custom_call.1} parent=1 // pred_check
      _
    $region19: #{tpu_custom_call.1} parent=1 // pred_check_branch
      %29 = sbr.rel (0) target = $region21
    $region20: #{tpu_custom_call.1} parent=1 // pred_region
      _
    $region21: #{tpu_custom_call.1} parent=1 // pred_fallthru
      _
    // Predicated region
    $region22: #{tpu_custom_call.1} parent=1 // pred_check
      _
    $region23: #{tpu_custom_call.1} parent=1 // pred_check_branch
      %31 = sbr.rel (0) target = $region25
    $region24: #{tpu_custom_call.1} parent=1 // pred_region
      _
    $region25: #{tpu_custom_call.1} parent=1 // pred_fallthru
      _
    // Predicated region
    $region26: #{tpu_custom_call.1} parent=1 // pred_check
      _
    $region27: #{tpu_custom_call.1} parent=1 // pred_check_branch
      %33 = sbr.rel (0) target = $region29
    $region28: #{tpu_custom_call.1} parent=1 // pred_region
      _
    $region29: #{tpu_custom_call.1} parent=1 // pred_fallthru
      _
    // Predicated region
    $region30: #{tpu_custom_call.1} parent=1 // pred_check
      _
    $region31: #{tpu_custom_call.1} parent=1 // pred_check_branch
      %35 = sbr.rel (0) target = $region33
    $region32: #{tpu_custom_call.1} parent=1 // pred_region
      _
    $region33: #{tpu_custom_call.1} parent=1 // pred_fallthru
      _
    // Predicated region
    $region34: #{tpu_custom_call.1} parent=1 // pred_check
      _
    $region35: #{tpu_custom_call.1} parent=1 // pred_check_branch
      %37 = sbr.rel (0) target = $region37
    $region36: #{tpu_custom_call.1} parent=1 // pred_region
      _
    $region37: #{tpu_custom_call.1} parent=1 // pred_fallthru
      _
    // Predicated region
    $region38: #{tpu_custom_call.1} parent=1 // pred_check
      _
    $region39: #{tpu_custom_call.1} parent=1 // pred_check_branch
      %39 = sbr.rel (0) target = $region41
    $region40: #{tpu_custom_call.1} parent=1 // pred_region
      _
    $region41: #{tpu_custom_call.1} parent=1 // pred_fallthru
      _
    // Predicated region
    $region42: #{tpu_custom_call.1} parent=1 // pred_check
      _
    $region43: #{tpu_custom_call.1} parent=1 // pred_check_branch
      %41 = sbr.rel (0) target = $region45
    $region44: #{tpu_custom_call.1} parent=1 // pred_region
      _
    $region45: #{tpu_custom_call.1} parent=1 // pred_fallthru
      _
    %v42 = vld [vmem:[%s0] sm:$0x3f]
    %v43 = vld [vmem:[%s0 + $0x8] sm:$0x3f]
    %v44 = vld [vmem:[%s0 + $0x10] sm:$0x3f]
    %v45 = vld [vmem:[%s0 + $0x18] sm:$0x3f]
    %v46 = vld [vmem:[%s0 + $0x20] sm:$0x3f]
    %v47 = vld [vmem:[%s1] sm:$0x1f]
    %v48 = vld [vmem:[%s2] sm:$0xff]
    %v49 = vld [vmem:[%s2 + $0x8] sm:$0xff]
    %v50 = vld [vmem:[%s2 + $0x10] sm:$0xff]
    %v51 = vld [vmem:[%s2 + $0x18] sm:$0xff]
    %v52 = vld [vmem:[%s3] sm:$0xff]
    %v53 = vld [vmem:[%s3 + $0x8] sm:$0xff]
    %v54 = vld [vmem:[%s3 + $0x10] sm:$0xff]
    %v55 = vld [vmem:[%s3 + $0x18] sm:$0xff]
    %57 = vset.pattern.permute.xlu0 0
    %58 = vperm.xlu0 %57, %v52
    %v59 = vpop.permute.xlu0 %58
    %62 = vset.pattern.permute.xlu0 0
    %63 = vperm.xlu0 %62, %v53
    %v64 = vpop.permute.xlu0 %63
    %67 = vset.pattern.permute.xlu0 0
    %68 = vperm.xlu0 %67, %v54
    %v69 = vpop.permute.xlu0 %68
    %72 = vset.pattern.permute.xlu0 0
    %73 = vperm.xlu0 %72, %v55
    %v74 = vpop.permute.xlu0 %73
    %vm76 = vcmask 48128
    %v78 = vsel %vm76, %v48, 0
    %v81 = vsel %vm76, %v49, 0
    %v84 = vsel %vm76, %v50, 0
    %v87 = vsel %vm76, %v51, 0
    %vm89 = vcmask 1045504
    %v91 = vsel %vm89, %v42, 0
    %v94 = vsel %vm89, %v43, 0
    %v97 = vsel %vm89, %v44, 0
    %v100 = vsel %vm89, %v45, 0
    %v103 = vsel %vm89, %v46, 0
    %105 = vmatpush.msra.mxu0 0.0
    %106 = vmatpush.msra.mxu0 0.0
    %107 = vmatpush.msra.mxu0 0.0
    %108 = vmatpush.msra.mxu0 0.0
    %109 = vmatpush.msra.mxu0 0.0
    %110 = vmatpush.msra.mxu0 0.0
    %111 = vmatpush.msra.mxu0 0.0
    %112 = vmatpush.msra.mxu0 0.0
    %113 = vmatpush.msra.mxu0 0.0
    %114 = vmatpush.msra.mxu0 0.0
    %115 = vmatpush.msra.mxu0 0.0
    %116 = vmatpush.msra.mxu0 0.0
    %117 = vmatpush.msra.mxu0 0.0
    %118 = vmatpush.msra.mxu0 0.0
    %119 = vmatpush.msra.mxu0 0.0
    %120 = vmatpush.msra.mxu0 %v91
    %121 = vmatmul.f32.gmra.mxu0 %v78
    %v122 = vpop.f32.mrf.mxu0
    %v123 = vadd.f32 %v59, %v122
    %124 = vmatmul.f32.gmra.mxu0 %v81
    %v125 = vpop.f32.mrf.mxu0
    %v126 = vadd.f32 %v64, %v125
    %127 = vmatmul.f32.gmra.mxu0 %v84
    %v128 = vpop.f32.mrf.mxu0
    %v129 = vadd.f32 %v69, %v128
    %130 = vmatmul.f32.gmra.mxu0 %v87
    %v131 = vpop.f32.mrf.mxu0
    %v132 = vadd.f32 %v74, %v131
    %133 = vdwg.mxu0
    %134 = vmatpush.msra.mxu0 0.0
    %135 = vmatpush.msra.mxu0 0.0
    %136 = vmatpush.msra.mxu0 0.0
    %137 = vmatpush.msra.mxu0 0.0
    %138 = vmatpush.msra.mxu0 0.0
    %139 = vmatpush.msra.mxu0 0.0
    %140 = vmatpush.msra.mxu0 0.0
    %141 = vmatpush.msra.mxu0 0.0
    %142 = vmatpush.msra.mxu0 0.0
    %143 = vmatpush.msra.mxu0 0.0
    %144 = vmatpush.msra.mxu0 0.0
    %145 = vmatpush.msra.mxu0 0.0
    %146 = vmatpush.msra.mxu0 0.0
    %147 = vmatpush.msra.mxu0 0.0
    %148 = vmatpush.msra.mxu0 0.0
    %149 = vmatpush.msra.mxu0 %v94
    %150 = vmatmul.f32.gmra.mxu0 %v78
    %v151 = vpop.f32.mrf.mxu0
    %v152 = vadd.f32 %v59, %v151
    %153 = vmatmul.f32.gmra.mxu0 %v81
    %v154 = vpop.f32.mrf.mxu0
    %v155 = vadd.f32 %v64, %v154
    %156 = vmatmul.f32.gmra.mxu0 %v84
    %v157 = vpop.f32.mrf.mxu0
    %v158 = vadd.f32 %v69, %v157
    %159 = vmatmul.f32.gmra.mxu0 %v87
    %v160 = vpop.f32.mrf.mxu0
    %v161 = vadd.f32 %v74, %v160
    %162 = vdwg.mxu0
    %163 = vmatpush.msra.mxu0 0.0
    %164 = vmatpush.msra.mxu0 0.0
    %165 = vmatpush.msra.mxu0 0.0
    %166 = vmatpush.msra.mxu0 0.0
    %167 = vmatpush.msra.mxu0 0.0
    %168 = vmatpush.msra.mxu0 0.0
    %169 = vmatpush.msra.mxu0 0.0
    %170 = vmatpush.msra.mxu0 0.0
    %171 = vmatpush.msra.mxu0 0.0
    %172 = vmatpush.msra.mxu0 0.0
    %173 = vmatpush.msra.mxu0 0.0
    %174 = vmatpush.msra.mxu0 0.0
    %175 = vmatpush.msra.mxu0 0.0
    %176 = vmatpush.msra.mxu0 0.0
    %177 = vmatpush.msra.mxu0 0.0
    %178 = vmatpush.msra.mxu0 %v97
    %179 = vmatmul.f32.gmra.mxu0 %v78
    %v180 = vpop.f32.mrf.mxu0
    %v181 = vadd.f32 %v59, %v180
    %182 = vmatmul.f32.gmra.mxu0 %v81
    %v183 = vpop.f32.mrf.mxu0
    %v184 = vadd.f32 %v64, %v183
    %185 = vmatmul.f32.gmra.mxu0 %v84
    %v186 = vpop.f32.mrf.mxu0
    %v187 = vadd.f32 %v69, %v186
    %188 = vmatmul.f32.gmra.mxu0 %v87
    %v189 = vpop.f32.mrf.mxu0
    %v190 = vadd.f32 %v74, %v189
    %191 = vdwg.mxu0
    %192 = vmatpush.msra.mxu0 0.0
    %193 = vmatpush.msra.mxu0 0.0
    %194 = vmatpush.msra.mxu0 0.0
    %195 = vmatpush.msra.mxu0 0.0
    %196 = vmatpush.msra.mxu0 0.0
    %197 = vmatpush.msra.mxu0 0.0
    %198 = vmatpush.msra.mxu0 0.0
    %199 = vmatpush.msra.mxu0 0.0
    %200 = vmatpush.msra.mxu0 0.0
    %201 = vmatpush.msra.mxu0 0.0
    %202 = vmatpush.msra.mxu0 0.0
    %203 = vmatpush.msra.mxu0 0.0
    %204 = vmatpush.msra.mxu0 0.0
    %205 = vmatpush.msra.mxu0 0.0
    %206 = vmatpush.msra.mxu0 0.0
    %207 = vmatpush.msra.mxu0 %v100
    %208 = vmatmul.f32.gmra.mxu0 %v78
    %v209 = vpop.f32.mrf.mxu0
    %v210 = vadd.f32 %v59, %v209
    %211 = vmatmul.f32.gmra.mxu0 %v81
    %v212 = vpop.f32.mrf.mxu0
    %v213 = vadd.f32 %v64, %v212
    %214 = vmatmul.f32.gmra.mxu0 %v84
    %v215 = vpop.f32.mrf.mxu0
    %v216 = vadd.f32 %v69, %v215
    %217 = vmatmul.f32.gmra.mxu0 %v87
    %v218 = vpop.f32.mrf.mxu0
    %v219 = vadd.f32 %v74, %v218
    %220 = vdwg.mxu0
    %221 = vmatpush.msra.mxu0 0.0
    %222 = vmatpush.msra.mxu0 0.0
    %223 = vmatpush.msra.mxu0 0.0
    %224 = vmatpush.msra.mxu0 0.0
    %225 = vmatpush.msra.mxu0 0.0
    %226 = vmatpush.msra.mxu0 0.0
    %227 = vmatpush.msra.mxu0 0.0
    %228 = vmatpush.msra.mxu0 0.0
    %229 = vmatpush.msra.mxu0 0.0
    %230 = vmatpush.msra.mxu0 0.0
    %231 = vmatpush.msra.mxu0 0.0
    %232 = vmatpush.msra.mxu0 0.0
    %233 = vmatpush.msra.mxu0 0.0
    %234 = vmatpush.msra.mxu0 0.0
    %235 = vmatpush.msra.mxu0 0.0
    %236 = vmatpush.msra.mxu0 %v103
    %237 = vmatmul.f32.gmra.mxu0 %v78
    %v238 = vpop.f32.mrf.mxu0
    %v239 = vadd.f32 %v59, %v238
    %240 = vmatmul.f32.gmra.mxu0 %v81
    %v241 = vpop.f32.mrf.mxu0
    %v242 = vadd.f32 %v64, %v241
    %243 = vmatmul.f32.gmra.mxu0 %v84
    %v244 = vpop.f32.mrf.mxu0
    %v245 = vadd.f32 %v69, %v244
    %246 = vmatmul.f32.gmra.mxu0 %v87
    %v247 = vpop.f32.mrf.mxu0
    %v248 = vadd.f32 %v74, %v247
    %249 = vdwg.mxu0
    %v250 = vmax.f32 %v123, 0.0
    %v251 = vmax.f32 %v152, 0.0
    %v252 = vmax.f32 %v181, 0.0
    %v253 = vmax.f32 %v210, 0.0
    %v254 = vmax.f32 %v239, 0.0
    %v255 = vmax.f32 %v126, 0.0
    %v256 = vmax.f32 %v155, 0.0
    %v257 = vmax.f32 %v184, 0.0
    %v258 = vmax.f32 %v213, 0.0
    %v259 = vmax.f32 %v242, 0.0
    %v260 = vmax.f32 %v129, 0.0
    %v261 = vmax.f32 %v158, 0.0
    %v262 = vmax.f32 %v187, 0.0
    %v263 = vmax.f32 %v216, 0.0
    %v264 = vmax.f32 %v245, 0.0
    %v265 = vmax.f32 %v132, 0.0
    %v266 = vmax.f32 %v161, 0.0
    %v267 = vmax.f32 %v190, 0.0
    %v268 = vmax.f32 %v219, 0.0
    %v269 = vmax.f32 %v248, 0.0
    %v270 = vld [vmem:[%s4] sm:$0xff]
    %v271 = vld [vmem:[%s4 + $0x8] sm:$0xff]
    %v272 = vld [vmem:[%s4 + $0x10] sm:$0xff]
    %v273 = vld [vmem:[%s4 + $0x18] sm:$0xff]
    %v274 = vld [vmem:[%s5] sm:$0xff]
    %v275 = vld [vmem:[%s5 + $0x8] sm:$0xff]
    %v276 = vld [vmem:[%s5 + $0x10] sm:$0xff]
    %v277 = vld [vmem:[%s5 + $0x18] sm:$0xff]
    %279 = vset.pattern.permute.xlu0 0
    %280 = vperm.xlu0 %279, %v274
    %v281 = vpop.permute.xlu0 %280
    %284 = vset.pattern.permute.xlu0 0
    %285 = vperm.xlu0 %284, %v275
    %v286 = vpop.permute.xlu0 %285
    %289 = vset.pattern.permute.xlu0 0
    %290 = vperm.xlu0 %289, %v276
    %v291 = vpop.permute.xlu0 %290
    %294 = vset.pattern.permute.xlu0 0
    %295 = vperm.xlu0 %294, %v277
    %v296 = vpop.permute.xlu0 %295
    %vm298 = vcmask 261120
    %v300 = vsel %vm298, %v270, 0
    %v303 = vsel %vm298, %v271, 0
    %v306 = vsel %vm298, %v272, 0
    %v309 = vsel %vm298, %v273, 0
    %311 = vmatpush.msra.mxu0 0.0
    %312 = vmatpush.msra.mxu0 0.0
    %313 = vmatpush.msra.mxu0 0.0
    %314 = vmatpush.msra.mxu0 0.0
    %315 = vmatpush.msra.mxu0 0.0
    %316 = vmatpush.msra.mxu0 0.0
    %317 = vmatpush.msra.mxu0 0.0
    %318 = vmatpush.msra.mxu0 0.0
    %319 = vmatpush.msra.mxu0 0.0
    %320 = vmatpush.msra.mxu0 0.0
    %321 = vmatpush.msra.mxu0 0.0
    %322 = vmatpush.msra.mxu0 0.0
    %323 = vmatpush.msra.mxu0 %v265
    %324 = vmatpush.msra.mxu0 %v260
    %325 = vmatpush.msra.mxu0 %v255
    %326 = vmatpush.msra.mxu0 %v250
    %327 = vmatmul.f32.gmra.mxu0 %v300
    %v328 = vpop.f32.mrf.mxu0
    %v329 = vadd.f32 %v281, %v328
    %330 = vmatmul.f32.gmra.mxu0 %v303
    %v331 = vpop.f32.mrf.mxu0
    %v332 = vadd.f32 %v286, %v331
    %333 = vmatmul.f32.gmra.mxu0 %v306
    %v334 = vpop.f32.mrf.mxu0
    %v335 = vadd.f32 %v291, %v334
    %336 = vmatmul.f32.gmra.mxu0 %v309
    %v337 = vpop.f32.mrf.mxu0
    %v338 = vadd.f32 %v296, %v337
    %339 = vdwg.mxu0
    %340 = vmatpush.msra.mxu0 0.0
    %341 = vmatpush.msra.mxu0 0.0
    %342 = vmatpush.msra.mxu0 0.0
    %343 = vmatpush.msra.mxu0 0.0
    %344 = vmatpush.msra.mxu0 0.0
    %345 = vmatpush.msra.mxu0 0.0
    %346 = vmatpush.msra.mxu0 0.0
    %347 = vmatpush.msra.mxu0 0.0
    %348 = vmatpush.msra.mxu0 0.0
    %349 = vmatpush.msra.mxu0 0.0
    %350 = vmatpush.msra.mxu0 0.0
    %351 = vmatpush.msra.mxu0 0.0
    %352 = vmatpush.msra.mxu0 %v266
    %353 = vmatpush.msra.mxu0 %v261
    %354 = vmatpush.msra.mxu0 %v256
    %355 = vmatpush.msra.mxu0 %v251
    %356 = vmatmul.f32.gmra.mxu0 %v300
    %v357 = vpop.f32.mrf.mxu0
    %v358 = vadd.f32 %v281, %v357
    %359 = vmatmul.f32.gmra.mxu0 %v303
    %v360 = vpop.f32.mrf.mxu0
    %v361 = vadd.f32 %v286, %v360
    %362 = vmatmul.f32.gmra.mxu0 %v306
    %v363 = vpop.f32.mrf.mxu0
    %v364 = vadd.f32 %v291, %v363
    %365 = vmatmul.f32.gmra.mxu0 %v309
    %v366 = vpop.f32.mrf.mxu0
    %v367 = vadd.f32 %v296, %v366
    %368 = vdwg.mxu0
    %369 = vmatpush.msra.mxu0 0.0
    %370 = vmatpush.msra.mxu0 0.0
    %371 = vmatpush.msra.mxu0 0.0
    %372 = vmatpush.msra.mxu0 0.0
    %373 = vmatpush.msra.mxu0 0.0
    %374 = vmatpush.msra.mxu0 0.0
    %375 = vmatpush.msra.mxu0 0.0
    %376 = vmatpush.msra.mxu0 0.0
    %377 = vmatpush.msra.mxu0 0.0
    %378 = vmatpush.msra.mxu0 0.0
    %379 = vmatpush.msra.mxu0 0.0
    %380 = vmatpush.msra.mxu0 0.0
    %381 = vmatpush.msra.mxu0 %v267
    %382 = vmatpush.msra.mxu0 %v262
    %383 = vmatpush.msra.mxu0 %v257
    %384 = vmatpush.msra.mxu0 %v252
    %385 = vmatmul.f32.gmra.mxu0 %v300
    %v386 = vpop.f32.mrf.mxu0
    %v387 = vadd.f32 %v281, %v386
    %388 = vmatmul.f32.gmra.mxu0 %v303
    %v389 = vpop.f32.mrf.mxu0
    %v390 = vadd.f32 %v286, %v389
    %391 = vmatmul.f32.gmra.mxu0 %v306
    %v392 = vpop.f32.mrf.mxu0
    %v393 = vadd.f32 %v291, %v392
    %394 = vmatmul.f32.gmra.mxu0 %v309
    %v395 = vpop.f32.mrf.mxu0
    %v396 = vadd.f32 %v296, %v395
    %397 = vdwg.mxu0
    %398 = vmatpush.msra.mxu0 0.0
    %399 = vmatpush.msra.mxu0 0.0
    %400 = vmatpush.msra.mxu0 0.0
    %401 = vmatpush.msra.mxu0 0.0
    %402 = vmatpush.msra.mxu0 0.0
    %403 = vmatpush.msra.mxu0 0.0
    %404 = vmatpush.msra.mxu0 0.0
    %405 = vmatpush.msra.mxu0 0.0
    %406 = vmatpush.msra.mxu0 0.0
    %407 = vmatpush.msra.mxu0 0.0
    %408 = vmatpush.msra.mxu0 0.0
    %409 = vmatpush.msra.mxu0 0.0
    %410 = vmatpush.msra.mxu0 %v268
    %411 = vmatpush.msra.mxu0 %v263
    %412 = vmatpush.msra.mxu0 %v258
    %413 = vmatpush.msra.mxu0 %v253
    %414 = vmatmul.f32.gmra.mxu0 %v300
    %v415 = vpop.f32.mrf.mxu0
    %v416 = vadd.f32 %v281, %v415
    %417 = vmatmul.f32.gmra.mxu0 %v303
    %v418 = vpop.f32.mrf.mxu0
    %v419 = vadd.f32 %v286, %v418
    %420 = vmatmul.f32.gmra.mxu0 %v306
    %v421 = vpop.f32.mrf.mxu0
    %v422 = vadd.f32 %v291, %v421
    %423 = vmatmul.f32.gmra.mxu0 %v309
    %v424 = vpop.f32.mrf.mxu0
    %v425 = vadd.f32 %v296, %v424
    %426 = vdwg.mxu0
    %427 = vmatpush.msra.mxu0 0.0
    %428 = vmatpush.msra.mxu0 0.0
    %429 = vmatpush.msra.mxu0 0.0
    %430 = vmatpush.msra.mxu0 0.0
    %431 = vmatpush.msra.mxu0 0.0
    %432 = vmatpush.msra.mxu0 0.0
    %433 = vmatpush.msra.mxu0 0.0
    %434 = vmatpush.msra.mxu0 0.0
    %435 = vmatpush.msra.mxu0 0.0
    %436 = vmatpush.msra.mxu0 0.0
    %437 = vmatpush.msra.mxu0 0.0
    %438 = vmatpush.msra.mxu0 0.0
    %439 = vmatpush.msra.mxu0 %v269
    %440 = vmatpush.msra.mxu0 %v264
    %441 = vmatpush.msra.mxu0 %v259
    %442 = vmatpush.msra.mxu0 %v254
    %443 = vmatmul.f32.gmra.mxu0 %v300
    %v444 = vpop.f32.mrf.mxu0
    %v445 = vadd.f32 %v281, %v444
    %446 = vmatmul.f32.gmra.mxu0 %v303
    %v447 = vpop.f32.mrf.mxu0
    %v448 = vadd.f32 %v286, %v447
    %449 = vmatmul.f32.gmra.mxu0 %v306
    %v450 = vpop.f32.mrf.mxu0
    %v451 = vadd.f32 %v291, %v450
    %452 = vmatmul.f32.gmra.mxu0 %v309
    %v453 = vpop.f32.mrf.mxu0
    %v454 = vadd.f32 %v296, %v453
    %455 = vdwg.mxu0
    %v456 = vmax.f32 %v329, 0.0
    %v457 = vmax.f32 %v358, 0.0
    %v458 = vmax.f32 %v387, 0.0
    %v459 = vmax.f32 %v416, 0.0
    %v460 = vmax.f32 %v445, 0.0
    %v461 = vmax.f32 %v332, 0.0
    %v462 = vmax.f32 %v361, 0.0
    %v463 = vmax.f32 %v390, 0.0
    %v464 = vmax.f32 %v419, 0.0
    %v465 = vmax.f32 %v448, 0.0
    %v466 = vmax.f32 %v335, 0.0
    %v467 = vmax.f32 %v364, 0.0
    %v468 = vmax.f32 %v393, 0.0
    %v469 = vmax.f32 %v422, 0.0
    %v470 = vmax.f32 %v451, 0.0
    %v471 = vmax.f32 %v338, 0.0
    %v472 = vmax.f32 %v367, 0.0
    %v473 = vmax.f32 %v396, 0.0
    %v474 = vmax.f32 %v425, 0.0
    %v475 = vmax.f32 %v454, 0.0
    %v476 = vld [vmem:[%s6] sm:$0xff]
    %v477 = vld [vmem:[%s6 + $0x8] sm:$0xff]
    %v478 = vld [vmem:[%s6 + $0x10] sm:$0xff]
    %v479 = vld [vmem:[%s6 + $0x18] sm:$0xff]
    %v480 = vld [vmem:[%s6 + $0x20] sm:$0xff]
    %v481 = vld [vmem:[%s6 + $0x28] sm:$0xff]
    %v482 = vld [vmem:[%s6 + $0x30] sm:$0xff]
    %v483 = vld [vmem:[%s6 + $0x38] sm:$0xff]
    %v484 = vld [vmem:[%s6 + $0x40] sm:$0xff]
    %v485 = vld [vmem:[%s6 + $0x48] sm:$0xff]
    %v486 = vld [vmem:[%s6 + $0x50] sm:$0xff]
    %v487 = vld [vmem:[%s6 + $0x58] sm:$0xff]
    %v488 = vld [vmem:[%s6 + $0x60] sm:$0xff]
    %v489 = vld [vmem:[%s6 + $0x68] sm:$0xff]
    %v490 = vld [vmem:[%s6 + $0x70] sm:$0xff]
    %v491 = vld [vmem:[%s6 + $0x78] sm:$0xff]
    %v492 = vld [vmem:[%s6 + $0x80] sm:$0xff]
    %v493 = vld [vmem:[%s6 + $0x88] sm:$0xff]
    %v494 = vld [vmem:[%s6 + $0x90] sm:$0xff]
    %v495 = vld [vmem:[%s6 + $0x98] sm:$0xff]
    %v496 = vld [vmem:[%s6 + $0xa0] sm:$0xff]
    %v497 = vld [vmem:[%s6 + $0xa8] sm:$0x7]
    %v499 = vsel %vm298, %v476, 0
    %v502 = vsel %vm298, %v477, 0
    %v505 = vsel %vm298, %v478, 0
    %v508 = vsel %vm298, %v479, 0
    %v511 = vsel %vm298, %v480, 0
    %v514 = vsel %vm298, %v481, 0
    %v517 = vsel %vm298, %v482, 0
    %v520 = vsel %vm298, %v483, 0
    %v523 = vsel %vm298, %v484, 0
    %v526 = vsel %vm298, %v485, 0
    %v529 = vsel %vm298, %v486, 0
    %v532 = vsel %vm298, %v487, 0
    %v535 = vsel %vm298, %v488, 0
    %v538 = vsel %vm298, %v489, 0
    %v541 = vsel %vm298, %v490, 0
    %v544 = vsel %vm298, %v491, 0
    %v547 = vsel %vm298, %v492, 0
    %v550 = vsel %vm298, %v493, 0
    %v553 = vsel %vm298, %v494, 0
    %v556 = vsel %vm298, %v495, 0
    %v559 = vsel %vm298, %v496, 0
    %v562 = vsel %vm298, %v497, 0
    %564 = vmatpush.msra.mxu0 0.0
    %565 = vmatpush.msra.mxu0 0.0
    %566 = vmatpush.msra.mxu0 0.0
    %567 = vmatpush.msra.mxu0 0.0
    %568 = vmatpush.msra.mxu0 0.0
    %569 = vmatpush.msra.mxu0 0.0
    %570 = vmatpush.msra.mxu0 0.0
    %571 = vmatpush.msra.mxu0 0.0
    %572 = vmatpush.msra.mxu0 0.0
    %573 = vmatpush.msra.mxu0 0.0
    %574 = vmatpush.msra.mxu0 0.0
    %575 = vmatpush.msra.mxu0 0.0
    %576 = vmatpush.msra.mxu0 %v471
    %577 = vmatpush.msra.mxu0 %v466
    %578 = vmatpush.msra.mxu0 %v461
    %579 = vmatpush.msra.mxu0 %v456
    %580 = vmatmul.f32.gmra.mxu0 %v499
    %v581 = vpop.f32.mrf.mxu0
    %v582 = vadd.f32 0.0, %v581
    %583 = vmatmul.f32.gmra.mxu0 %v502
    %v584 = vpop.f32.mrf.mxu0
    %v585 = vadd.f32 0.0, %v584
    %586 = vmatmul.f32.gmra.mxu0 %v505
    %v587 = vpop.f32.mrf.mxu0
    %v588 = vadd.f32 0.0, %v587
    %589 = vmatmul.f32.gmra.mxu0 %v508
    %v590 = vpop.f32.mrf.mxu0
    %v591 = vadd.f32 0.0, %v590
    %592 = vmatmul.f32.gmra.mxu0 %v511
    %v593 = vpop.f32.mrf.mxu0
    %v594 = vadd.f32 0.0, %v593
    %595 = vmatmul.f32.gmra.mxu0 %v514
    %v596 = vpop.f32.mrf.mxu0
    %v597 = vadd.f32 0.0, %v596
    %598 = vmatmul.f32.gmra.mxu0 %v517
    %v599 = vpop.f32.mrf.mxu0
    %v600 = vadd.f32 0.0, %v599
    %601 = vmatmul.f32.gmra.mxu0 %v520
    %v602 = vpop.f32.mrf.mxu0
    %v603 = vadd.f32 0.0, %v602
    %604 = vmatmul.f32.gmra.mxu0 %v523
    %v605 = vpop.f32.mrf.mxu0
    %v606 = vadd.f32 0.0, %v605
    %607 = vmatmul.f32.gmra.mxu0 %v526
    %v608 = vpop.f32.mrf.mxu0
    %v609 = vadd.f32 0.0, %v608
    %610 = vmatmul.f32.gmra.mxu0 %v529
    %v611 = vpop.f32.mrf.mxu0
    %v612 = vadd.f32 0.0, %v611
    %613 = vmatmul.f32.gmra.mxu0 %v532
    %v614 = vpop.f32.mrf.mxu0
    %v615 = vadd.f32 0.0, %v614
    %616 = vmatmul.f32.gmra.mxu0 %v535
    %v617 = vpop.f32.mrf.mxu0
    %v618 = vadd.f32 0.0, %v617
    %619 = vmatmul.f32.gmra.mxu0 %v538
    %v620 = vpop.f32.mrf.mxu0
    %v621 = vadd.f32 0.0, %v620
    %622 = vmatmul.f32.gmra.mxu0 %v541
    %v623 = vpop.f32.mrf.mxu0
    %v624 = vadd.f32 0.0, %v623
    %625 = vmatmul.f32.gmra.mxu0 %v544
    %v626 = vpop.f32.mrf.mxu0
    %v627 = vadd.f32 0.0, %v626
    %628 = vmatmul.f32.gmra.mxu0 %v547
    %v629 = vpop.f32.mrf.mxu0
    %v630 = vadd.f32 0.0, %v629
    %631 = vmatmul.f32.gmra.mxu0 %v550
    %v632 = vpop.f32.mrf.mxu0
    %v633 = vadd.f32 0.0, %v632
    %634 = vmatmul.f32.gmra.mxu0 %v553
    %v635 = vpop.f32.mrf.mxu0
    %v636 = vadd.f32 0.0, %v635
    %637 = vmatmul.f32.gmra.mxu0 %v556
    %v638 = vpop.f32.mrf.mxu0
    %v639 = vadd.f32 0.0, %v638
    %640 = vmatmul.f32.gmra.mxu0 %v559
    %v641 = vpop.f32.mrf.mxu0
    %v642 = vadd.f32 0.0, %v641
    %643 = vmatmul.f32.gmra.mxu0 %v562
    %v644 = vpop.f32.mrf.mxu0
    %v645 = vadd.f32 0.0, %v644
    %646 = vdwg.mxu0
    %647 = vmatpush.msra.mxu0 0.0
    %648 = vmatpush.msra.mxu0 0.0
    %649 = vmatpush.msra.mxu0 0.0
    %650 = vmatpush.msra.mxu0 0.0
    %651 = vmatpush.msra.mxu0 0.0
    %652 = vmatpush.msra.mxu0 0.0
    %653 = vmatpush.msra.mxu0 0.0
    %654 = vmatpush.msra.mxu0 0.0
    %655 = vmatpush.msra.mxu0 0.0
    %656 = vmatpush.msra.mxu0 0.0
    %657 = vmatpush.msra.mxu0 0.0
    %658 = vmatpush.msra.mxu0 0.0
    %659 = vmatpush.msra.mxu0 %v472
    %660 = vmatpush.msra.mxu0 %v467
    %661 = vmatpush.msra.mxu0 %v462
    %662 = vmatpush.msra.mxu0 %v457
    %663 = vmatmul.f32.gmra.mxu0 %v499
    %v664 = vpop.f32.mrf.mxu0
    %v665 = vadd.f32 0.0, %v664
    %666 = vmatmul.f32.gmra.mxu0 %v502
    %v667 = vpop.f32.mrf.mxu0
    %v668 = vadd.f32 0.0, %v667
    %669 = vmatmul.f32.gmra.mxu0 %v505
    %v670 = vpop.f32.mrf.mxu0
    %v671 = vadd.f32 0.0, %v670
    %672 = vmatmul.f32.gmra.mxu0 %v508
    %v673 = vpop.f32.mrf.mxu0
    %v674 = vadd.f32 0.0, %v673
    %675 = vmatmul.f32.gmra.mxu0 %v511
    %v676 = vpop.f32.mrf.mxu0
    %v677 = vadd.f32 0.0, %v676
    %678 = vmatmul.f32.gmra.mxu0 %v514
    %v679 = vpop.f32.mrf.mxu0
    %v680 = vadd.f32 0.0, %v679
    %681 = vmatmul.f32.gmra.mxu0 %v517
    %v682 = vpop.f32.mrf.mxu0
    %v683 = vadd.f32 0.0, %v682
    %684 = vmatmul.f32.gmra.mxu0 %v520
    %v685 = vpop.f32.mrf.mxu0
    %v686 = vadd.f32 0.0, %v685
    %687 = vmatmul.f32.gmra.mxu0 %v523
    %v688 = vpop.f32.mrf.mxu0
    %v689 = vadd.f32 0.0, %v688
    %690 = vmatmul.f32.gmra.mxu0 %v526
    %v691 = vpop.f32.mrf.mxu0
    %v692 = vadd.f32 0.0, %v691
    %693 = vmatmul.f32.gmra.mxu0 %v529
    %v694 = vpop.f32.mrf.mxu0
    %v695 = vadd.f32 0.0, %v694
    %696 = vmatmul.f32.gmra.mxu0 %v532
    %v697 = vpop.f32.mrf.mxu0
    %v698 = vadd.f32 0.0, %v697
    %699 = vmatmul.f32.gmra.mxu0 %v535
    %v700 = vpop.f32.mrf.mxu0
    %v701 = vadd.f32 0.0, %v700
    %702 = vmatmul.f32.gmra.mxu0 %v538
    %v703 = vpop.f32.mrf.mxu0
    %v704 = vadd.f32 0.0, %v703
    %705 = vmatmul.f32.gmra.mxu0 %v541
    %v706 = vpop.f32.mrf.mxu0
    %v707 = vadd.f32 0.0, %v706
    %708 = vmatmul.f32.gmra.mxu0 %v544
    %v709 = vpop.f32.mrf.mxu0
    %v710 = vadd.f32 0.0, %v709
    %711 = vmatmul.f32.gmra.mxu0 %v547
    %v712 = vpop.f32.mrf.mxu0
    %v713 = vadd.f32 0.0, %v712
    %714 = vmatmul.f32.gmra.mxu0 %v550
    %v715 = vpop.f32.mrf.mxu0
    %v716 = vadd.f32 0.0, %v715
    %717 = vmatmul.f32.gmra.mxu0 %v553
    %v718 = vpop.f32.mrf.mxu0
    %v719 = vadd.f32 0.0, %v718
    %720 = vmatmul.f32.gmra.mxu0 %v556
    %v721 = vpop.f32.mrf.mxu0
    %v722 = vadd.f32 0.0, %v721
    %723 = vmatmul.f32.gmra.mxu0 %v559
    %v724 = vpop.f32.mrf.mxu0
    %v725 = vadd.f32 0.0, %v724
    %726 = vmatmul.f32.gmra.mxu0 %v562
    %v727 = vpop.f32.mrf.mxu0
    %v728 = vadd.f32 0.0, %v727
    %729 = vdwg.mxu0
    %730 = vmatpush.msra.mxu0 0.0
    %731 = vmatpush.msra.mxu0 0.0
    %732 = vmatpush.msra.mxu0 0.0
    %733 = vmatpush.msra.mxu0 0.0
    %734 = vmatpush.msra.mxu0 0.0
    %735 = vmatpush.msra.mxu0 0.0
    %736 = vmatpush.msra.mxu0 0.0
    %737 = vmatpush.msra.mxu0 0.0
    %738 = vmatpush.msra.mxu0 0.0
    %739 = vmatpush.msra.mxu0 0.0
    %740 = vmatpush.msra.mxu0 0.0
    %741 = vmatpush.msra.mxu0 0.0
    %742 = vmatpush.msra.mxu0 %v473
    %743 = vmatpush.msra.mxu0 %v468
    %744 = vmatpush.msra.mxu0 %v463
    %745 = vmatpush.msra.mxu0 %v458
    %746 = vmatmul.f32.gmra.mxu0 %v499
    %v747 = vpop.f32.mrf.mxu0
    %v748 = vadd.f32 0.0, %v747
    %749 = vmatmul.f32.gmra.mxu0 %v502
    %v750 = vpop.f32.mrf.mxu0
    %v751 = vadd.f32 0.0, %v750
    %752 = vmatmul.f32.gmra.mxu0 %v505
    %v753 = vpop.f32.mrf.mxu0
    %v754 = vadd.f32 0.0, %v753
    %755 = vmatmul.f32.gmra.mxu0 %v508
    %v756 = vpop.f32.mrf.mxu0
    %v757 = vadd.f32 0.0, %v756
    %758 = vmatmul.f32.gmra.mxu0 %v511
    %v759 = vpop.f32.mrf.mxu0
    %v760 = vadd.f32 0.0, %v759
    %761 = vmatmul.f32.gmra.mxu0 %v514
    %v762 = vpop.f32.mrf.mxu0
    %v763 = vadd.f32 0.0, %v762
    %764 = vmatmul.f32.gmra.mxu0 %v517
    %v765 = vpop.f32.mrf.mxu0
    %v766 = vadd.f32 0.0, %v765
    %767 = vmatmul.f32.gmra.mxu0 %v520
    %v768 = vpop.f32.mrf.mxu0
    %v769 = vadd.f32 0.0, %v768
    %770 = vmatmul.f32.gmra.mxu0 %v523
    %v771 = vpop.f32.mrf.mxu0
    %v772 = vadd.f32 0.0, %v771
    %773 = vmatmul.f32.gmra.mxu0 %v526
    %v774 = vpop.f32.mrf.mxu0
    %v775 = vadd.f32 0.0, %v774
    %776 = vmatmul.f32.gmra.mxu0 %v529
    %v777 = vpop.f32.mrf.mxu0
    %v778 = vadd.f32 0.0, %v777
    %779 = vmatmul.f32.gmra.mxu0 %v532
    %v780 = vpop.f32.mrf.mxu0
    %v781 = vadd.f32 0.0, %v780
    %782 = vmatmul.f32.gmra.mxu0 %v535
    %v783 = vpop.f32.mrf.mxu0
    %v784 = vadd.f32 0.0, %v783
    %785 = vmatmul.f32.gmra.mxu0 %v538
    %v786 = vpop.f32.mrf.mxu0
    %v787 = vadd.f32 0.0, %v786
    %788 = vmatmul.f32.gmra.mxu0 %v541
    %v789 = vpop.f32.mrf.mxu0
    %v790 = vadd.f32 0.0, %v789
    %791 = vmatmul.f32.gmra.mxu0 %v544
    %v792 = vpop.f32.mrf.mxu0
    %v793 = vadd.f32 0.0, %v792
    %794 = vmatmul.f32.gmra.mxu0 %v547
    %v795 = vpop.f32.mrf.mxu0
    %v796 = vadd.f32 0.0, %v795
    %797 = vmatmul.f32.gmra.mxu0 %v550
    %v798 = vpop.f32.mrf.mxu0
    %v799 = vadd.f32 0.0, %v798
    %800 = vmatmul.f32.gmra.mxu0 %v553
    %v801 = vpop.f32.mrf.mxu0
    %v802 = vadd.f32 0.0, %v801
    %803 = vmatmul.f32.gmra.mxu0 %v556
    %v804 = vpop.f32.mrf.mxu0
    %v805 = vadd.f32 0.0, %v804
    %806 = vmatmul.f32.gmra.mxu0 %v559
    %v807 = vpop.f32.mrf.mxu0
    %v808 = vadd.f32 0.0, %v807
    %809 = vmatmul.f32.gmra.mxu0 %v562
    %v810 = vpop.f32.mrf.mxu0
    %v811 = vadd.f32 0.0, %v810
    %812 = vdwg.mxu0
    %813 = vmatpush.msra.mxu0 0.0
    %814 = vmatpush.msra.mxu0 0.0
    %815 = vmatpush.msra.mxu0 0.0
    %816 = vmatpush.msra.mxu0 0.0
    %817 = vmatpush.msra.mxu0 0.0
    %818 = vmatpush.msra.mxu0 0.0
    %819 = vmatpush.msra.mxu0 0.0
    %820 = vmatpush.msra.mxu0 0.0
    %821 = vmatpush.msra.mxu0 0.0
    %822 = vmatpush.msra.mxu0 0.0
    %823 = vmatpush.msra.mxu0 0.0
    %824 = vmatpush.msra.mxu0 0.0
    %825 = vmatpush.msra.mxu0 %v474
    %826 = vmatpush.msra.mxu0 %v469
    %827 = vmatpush.msra.mxu0 %v464
    %828 = vmatpush.msra.mxu0 %v459
    %829 = vmatmul.f32.gmra.mxu0 %v499
    %v830 = vpop.f32.mrf.mxu0
    %v831 = vadd.f32 0.0, %v830
    %832 = vmatmul.f32.gmra.mxu0 %v502
    %v833 = vpop.f32.mrf.mxu0
    %v834 = vadd.f32 0.0, %v833
    %835 = vmatmul.f32.gmra.mxu0 %v505
    %v836 = vpop.f32.mrf.mxu0
    %v837 = vadd.f32 0.0, %v836
    %838 = vmatmul.f32.gmra.mxu0 %v508
    %v839 = vpop.f32.mrf.mxu0
    %v840 = vadd.f32 0.0, %v839
    %841 = vmatmul.f32.gmra.mxu0 %v511
    %v842 = vpop.f32.mrf.mxu0
    %v843 = vadd.f32 0.0, %v842
    %844 = vmatmul.f32.gmra.mxu0 %v514
    %v845 = vpop.f32.mrf.mxu0
    %v846 = vadd.f32 0.0, %v845
    %847 = vmatmul.f32.gmra.mxu0 %v517
    %v848 = vpop.f32.mrf.mxu0
    %v849 = vadd.f32 0.0, %v848
    %850 = vmatmul.f32.gmra.mxu0 %v520
    %v851 = vpop.f32.mrf.mxu0
    %v852 = vadd.f32 0.0, %v851
    %853 = vmatmul.f32.gmra.mxu0 %v523
    %v854 = vpop.f32.mrf.mxu0
    %v855 = vadd.f32 0.0, %v854
    %856 = vmatmul.f32.gmra.mxu0 %v526
    %v857 = vpop.f32.mrf.mxu0
    %v858 = vadd.f32 0.0, %v857
    %859 = vmatmul.f32.gmra.mxu0 %v529
    %v860 = vpop.f32.mrf.mxu0
    %v861 = vadd.f32 0.0, %v860
    %862 = vmatmul.f32.gmra.mxu0 %v532
    %v863 = vpop.f32.mrf.mxu0
    %v864 = vadd.f32 0.0, %v863
    %865 = vmatmul.f32.gmra.mxu0 %v535
    %v866 = vpop.f32.mrf.mxu0
    %v867 = vadd.f32 0.0, %v866
    %868 = vmatmul.f32.gmra.mxu0 %v538
    %v869 = vpop.f32.mrf.mxu0
    %v870 = vadd.f32 0.0, %v869
    %871 = vmatmul.f32.gmra.mxu0 %v541
    %v872 = vpop.f32.mrf.mxu0
    %v873 = vadd.f32 0.0, %v872
    %874 = vmatmul.f32.gmra.mxu0 %v544
    %v875 = vpop.f32.mrf.mxu0
    %v876 = vadd.f32 0.0, %v875
    %877 = vmatmul.f32.gmra.mxu0 %v547
    %v878 = vpop.f32.mrf.mxu0
    %v879 = vadd.f32 0.0, %v878
    %880 = vmatmul.f32.gmra.mxu0 %v550
    %v881 = vpop.f32.mrf.mxu0
    %v882 = vadd.f32 0.0, %v881
    %883 = vmatmul.f32.gmra.mxu0 %v553
    %v884 = vpop.f32.mrf.mxu0
    %v885 = vadd.f32 0.0, %v884
    %886 = vmatmul.f32.gmra.mxu0 %v556
    %v887 = vpop.f32.mrf.mxu0
    %v888 = vadd.f32 0.0, %v887
    %889 = vmatmul.f32.gmra.mxu0 %v559
    %v890 = vpop.f32.mrf.mxu0
    %v891 = vadd.f32 0.0, %v890
    %892 = vmatmul.f32.gmra.mxu0 %v562
    %v893 = vpop.f32.mrf.mxu0
    %v894 = vadd.f32 0.0, %v893
    %895 = vdwg.mxu0
    %896 = vmatpush.msra.mxu0 0.0
    %897 = vmatpush.msra.mxu0 0.0
    %898 = vmatpush.msra.mxu0 0.0
    %899 = vmatpush.msra.mxu0 0.0
    %900 = vmatpush.msra.mxu0 0.0
    %901 = vmatpush.msra.mxu0 0.0
    %902 = vmatpush.msra.mxu0 0.0
    %903 = vmatpush.msra.mxu0 0.0
    %904 = vmatpush.msra.mxu0 0.0
    %905 = vmatpush.msra.mxu0 0.0
    %906 = vmatpush.msra.mxu0 0.0
    %907 = vmatpush.msra.mxu0 0.0
    %908 = vmatpush.msra.mxu0 %v475
    %909 = vmatpush.msra.mxu0 %v470
    %910 = vmatpush.msra.mxu0 %v465
    %911 = vmatpush.msra.mxu0 %v460
    %912 = vmatmul.f32.gmra.mxu0 %v499
    %v913 = vpop.f32.mrf.mxu0
    %v914 = vadd.f32 0.0, %v913
    %915 = vmatmul.f32.gmra.mxu0 %v502
    %v916 = vpop.f32.mrf.mxu0
    %v917 = vadd.f32 0.0, %v916
    %918 = vmatmul.f32.gmra.mxu0 %v505
    %v919 = vpop.f32.mrf.mxu0
    %v920 = vadd.f32 0.0, %v919
    %921 = vmatmul.f32.gmra.mxu0 %v508
    %v922 = vpop.f32.mrf.mxu0
    %v923 = vadd.f32 0.0, %v922
    %924 = vmatmul.f32.gmra.mxu0 %v511
    %v925 = vpop.f32.mrf.mxu0
    %v926 = vadd.f32 0.0, %v925
    %927 = vmatmul.f32.gmra.mxu0 %v514
    %v928 = vpop.f32.mrf.mxu0
    %v929 = vadd.f32 0.0, %v928
    %930 = vmatmul.f32.gmra.mxu0 %v517
    %v931 = vpop.f32.mrf.mxu0
    %v932 = vadd.f32 0.0, %v931
    %933 = vmatmul.f32.gmra.mxu0 %v520
    %v934 = vpop.f32.mrf.mxu0
    %v935 = vadd.f32 0.0, %v934
    %936 = vmatmul.f32.gmra.mxu0 %v523
    %v937 = vpop.f32.mrf.mxu0
    %v938 = vadd.f32 0.0, %v937
    %939 = vmatmul.f32.gmra.mxu0 %v526
    %v940 = vpop.f32.mrf.mxu0
    %v941 = vadd.f32 0.0, %v940
    %942 = vmatmul.f32.gmra.mxu0 %v529
    %v943 = vpop.f32.mrf.mxu0
    %v944 = vadd.f32 0.0, %v943
    %945 = vmatmul.f32.gmra.mxu0 %v532
    %v946 = vpop.f32.mrf.mxu0
    %v947 = vadd.f32 0.0, %v946
    %948 = vmatmul.f32.gmra.mxu0 %v535
    %v949 = vpop.f32.mrf.mxu0
    %v950 = vadd.f32 0.0, %v949
    %951 = vmatmul.f32.gmra.mxu0 %v538
    %v952 = vpop.f32.mrf.mxu0
    %v953 = vadd.f32 0.0, %v952
    %954 = vmatmul.f32.gmra.mxu0 %v541
    %v955 = vpop.f32.mrf.mxu0
    %v956 = vadd.f32 0.0, %v955
    %957 = vmatmul.f32.gmra.mxu0 %v544
    %v958 = vpop.f32.mrf.mxu0
    %v959 = vadd.f32 0.0, %v958
    %960 = vmatmul.f32.gmra.mxu0 %v547
    %v961 = vpop.f32.mrf.mxu0
    %v962 = vadd.f32 0.0, %v961
    %963 = vmatmul.f32.gmra.mxu0 %v550
    %v964 = vpop.f32.mrf.mxu0
    %v965 = vadd.f32 0.0, %v964
    %966 = vmatmul.f32.gmra.mxu0 %v553
    %v967 = vpop.f32.mrf.mxu0
    %v968 = vadd.f32 0.0, %v967
    %969 = vmatmul.f32.gmra.mxu0 %v556
    %v970 = vpop.f32.mrf.mxu0
    %v971 = vadd.f32 0.0, %v970
    %972 = vmatmul.f32.gmra.mxu0 %v559
    %v973 = vpop.f32.mrf.mxu0
    %v974 = vadd.f32 0.0, %v973
    %975 = vmatmul.f32.gmra.mxu0 %v562
    %v976 = vpop.f32.mrf.mxu0
    %v977 = vadd.f32 0.0, %v976
    %978 = vdwg.mxu0
    %v979 = vld [vmem:[%s7] sm:$0xff]
    %v980 = vld [vmem:[%s7 + $0x8] sm:$0x7]
    %982 = vset.pattern.permute.xlu0 0
    %983 = vperm.xlu0 %982, %v979
    %v984 = vpop.permute.xlu0 %983
    %987 = vset.pattern.permute.xlu0 0
    %988 = vperm.xlu0 %987, %v980
    %v989 = vpop.permute.xlu0 %988
    %v991 = vadd.f32 %v642, %v984
    %v992 = vadd.f32 %v725, %v984
    %v993 = vadd.f32 %v808, %v984
    %v994 = vadd.f32 %v891, %v984
    %v995 = vadd.f32 %v974, %v984
    %v996 = vadd.f32 %v645, %v989
    %v997 = vadd.f32 %v728, %v989
    %v998 = vadd.f32 %v811, %v989
    %v999 = vadd.f32 %v894, %v989
    %v1000 = vadd.f32 %v977, %v989
    %vm1001 = vcmask 1042432
    %v1002 = vsel %vm1001, %v996, -inf
    %v1003 = vmax.f32 %v991, %v1002
    %v1004 = vrot.slane %v1003, 4
    %v1005 = vmax.f32 %v1003, %v1004
    %v1006 = vrot.slane %v1005, 2
    %v1007 = vmax.f32 %v1005, %v1006
    %v1008 = vrot.slane %v1007, 1
    %v1009 = vmax.f32 %v1007, %v1008
    %v1010 = vsel %vm1001, %v997, -inf
    %v1011 = vmax.f32 %v992, %v1010
    %v1012 = vrot.slane %v1011, 4
    %v1013 = vmax.f32 %v1011, %v1012
    %v1014 = vrot.slane %v1013, 2
    %v1015 = vmax.f32 %v1013, %v1014
    %v1016 = vrot.slane %v1015, 1
    %v1017 = vmax.f32 %v1015, %v1016
    %v1018 = vsel %vm1001, %v998, -inf
    %v1019 = vmax.f32 %v993, %v1018
    %v1020 = vrot.slane %v1019, 4
    %v1021 = vmax.f32 %v1019, %v1020
    %v1022 = vrot.slane %v1021, 2
    %v1023 = vmax.f32 %v1021, %v1022
    %v1024 = vrot.slane %v1023, 1
    %v1025 = vmax.f32 %v1023, %v1024
    %v1026 = vsel %vm1001, %v999, -inf
    %v1027 = vmax.f32 %v994, %v1026
    %v1028 = vrot.slane %v1027, 4
    %v1029 = vmax.f32 %v1027, %v1028
    %v1030 = vrot.slane %v1029, 2
    %v1031 = vmax.f32 %v1029, %v1030
    %v1032 = vrot.slane %v1031, 1
    %v1033 = vmax.f32 %v1031, %v1032
    %v1034 = vsel %vm1001, %v1000, -inf
    %v1035 = vmax.f32 %v995, %v1034
    %v1036 = vrot.slane %v1035, 4
    %v1037 = vmax.f32 %v1035, %v1036
    %v1038 = vrot.slane %v1037, 2
    %v1039 = vmax.f32 %v1037, %v1038
    %v1040 = vrot.slane %v1039, 1
    %v1041 = vmax.f32 %v1039, %v1040
    %v1042 = vsub.f32 %v991, %v1009
    %v1043 = vsub.f32 %v992, %v1017
    %v1044 = vsub.f32 %v993, %v1025
    %v1045 = vsub.f32 %v994, %v1033
    %v1046 = vsub.f32 %v995, %v1041
    %v1047 = vsub.f32 %v996, %v1009
    %v1048 = vsub.f32 %v997, %v1017
    %v1049 = vsub.f32 %v998, %v1025
    %v1050 = vsub.f32 %v999, %v1033
    %v1051 = vsub.f32 %v1000, %v1041
    %v1052 = vmul.f32 %v1042, 1.442695
    %v1053 = vpow.pop %v1052
    %v1054 = vmul.f32 %v1043, 1.442695
    %v1055 = vpow.pop %v1054
    %v1056 = vmul.f32 %v1044, 1.442695
    %v1057 = vpow.pop %v1056
    %v1058 = vmul.f32 %v1045, 1.442695
    %v1059 = vpow.pop %v1058
    %v1060 = vmul.f32 %v1046, 1.442695
    %v1061 = vpow.pop %v1060
    %v1062 = vmul.f32 %v1047, 1.442695
    %v1063 = vpow.pop %v1062
    %v1064 = vmul.f32 %v1048, 1.442695
    %v1065 = vpow.pop %v1064
    %v1066 = vmul.f32 %v1049, 1.442695
    %v1067 = vpow.pop %v1066
    %v1068 = vmul.f32 %v1050, 1.442695
    %v1069 = vpow.pop %v1068
    %v1070 = vmul.f32 %v1051, 1.442695
    %v1071 = vpow.pop %v1070
    %v1072 = vsel %vm1001, %v1063, 0.0
    %v1073 = vadd.f32 %v1053, %v1072
    %v1074 = vrot.slane %v1073, 4
    %v1075 = vadd.f32 %v1073, %v1074
    %v1076 = vrot.slane %v1075, 2
    %v1077 = vadd.f32 %v1075, %v1076
    %v1078 = vrot.slane %v1077, 1
    %v1079 = vadd.f32 %v1077, %v1078
    %v1080 = vsel %vm1001, %v1065, 0.0
    %v1081 = vadd.f32 %v1055, %v1080
    %v1082 = vrot.slane %v1081, 4
    %v1083 = vadd.f32 %v1081, %v1082
    %v1084 = vrot.slane %v1083, 2
    %v1085 = vadd.f32 %v1083, %v1084
    %v1086 = vrot.slane %v1085, 1
    %v1087 = vadd.f32 %v1085, %v1086
    %v1088 = vsel %vm1001, %v1067, 0.0
    %v1089 = vadd.f32 %v1057, %v1088
    %v1090 = vrot.slane %v1089, 4
    %v1091 = vadd.f32 %v1089, %v1090
    %v1092 = vrot.slane %v1091, 2
    %v1093 = vadd.f32 %v1091, %v1092
    %v1094 = vrot.slane %v1093, 1
    %v1095 = vadd.f32 %v1093, %v1094
    %v1096 = vsel %vm1001, %v1069, 0.0
    %v1097 = vadd.f32 %v1059, %v1096
    %v1098 = vrot.slane %v1097, 4
    %v1099 = vadd.f32 %v1097, %v1098
    %v1100 = vrot.slane %v1099, 2
    %v1101 = vadd.f32 %v1099, %v1100
    %v1102 = vrot.slane %v1101, 1
    %v1103 = vadd.f32 %v1101, %v1102
    %v1104 = vsel %vm1001, %v1071, 0.0
    %v1105 = vadd.f32 %v1061, %v1104
    %v1106 = vrot.slane %v1105, 4
    %v1107 = vadd.f32 %v1105, %v1106
    %v1108 = vrot.slane %v1107, 2
    %v1109 = vadd.f32 %v1107, %v1108
    %v1110 = vrot.slane %v1109, 1
    %v1111 = vadd.f32 %v1109, %v1110
    %v1112 = vmul.f32 %v47, 10.0
    %v1113 = vceil.f32 %v1112
    %v1114 = vsub.f32 %v1113, %v1112
    %v1115 = vsub.f32 1.0, %v1114
    %v1116 = vsub.f32 %v1113, 1.0
    %vm1117 = vcmp.lt.f32.partialorder %v1116, 0.0
    %v1118 = vsel %vm1117, 1, 0
    %v1119 = vcvt.s32.f32 %v1118
    %v1120 = vadd.f32 %v1116, %v1119
    %v1121 = vcvt.f32.s32.to.zero.pseudo %v1120
    %v1122 = vcvt.f32.s32.to.zero.pseudo %v1113
    %v1123 = vlaneseq
    %v1124 = vshrl.u32 %v1123, 7
    %v1125 = vadd.s32 %v1124, 8
    %v1126 = vperm.slane %v1121, 0
    %v1127 = vperm.slane %v1121, 1
    %v1128 = vperm.slane %v1121, 2
    %v1129 = vperm.slane %v1121, 3
    %v1130 = vperm.slane %v1121, 4
    %vm1131 = vcmp.eq.s32.totalorder %v1124, %v1126
    %vm1132 = vcmp.eq.s32.totalorder %v1124, %v1127
    %vm1133 = vcmp.eq.s32.totalorder %v1124, %v1128
    %vm1134 = vcmp.eq.s32.totalorder %v1124, %v1129
    %vm1135 = vcmp.eq.s32.totalorder %v1124, %v1130
    %vm1136 = vcmp.eq.s32.totalorder %v1125, %v1126
    %vm1137 = vcmp.eq.s32.totalorder %v1125, %v1127
    %vm1138 = vcmp.eq.s32.totalorder %v1125, %v1128
    %vm1139 = vcmp.eq.s32.totalorder %v1125, %v1129
    %vm1140 = vcmp.eq.s32.totalorder %v1125, %v1130
    %v1141 = vsel %vm1131, %v1053, 0.0
    %v1142 = vsel %vm1132, %v1055, 0.0
    %v1143 = vsel %vm1133, %v1057, 0.0
    %v1144 = vsel %vm1134, %v1059, 0.0
    %v1145 = vsel %vm1135, %v1061, 0.0
    %v1146 = vsel %vm1136, %v1063, 0.0
    %v1147 = vsel %vm1137, %v1065, 0.0
    %v1148 = vsel %vm1138, %v1067, 0.0
    %v1149 = vsel %vm1139, %v1069, 0.0
    %v1150 = vsel %vm1140, %v1071, 0.0
    %v1151 = vsel %vm1001, %v1146, 0.0
    %v1152 = vadd.f32 %v1141, %v1151
    %v1153 = vrot.slane %v1152, 4
    %v1154 = vadd.f32 %v1152, %v1153
    %v1155 = vrot.slane %v1154, 2
    %v1156 = vadd.f32 %v1154, %v1155
    %v1157 = vrot.slane %v1156, 1
    %v1158 = vadd.f32 %v1156, %v1157
    %v1159 = vsel %vm1001, %v1147, 0.0
    %v1160 = vadd.f32 %v1142, %v1159
    %v1161 = vrot.slane %v1160, 4
    %v1162 = vadd.f32 %v1160, %v1161
    %v1163 = vrot.slane %v1162, 2
    %v1164 = vadd.f32 %v1162, %v1163
    %v1165 = vrot.slane %v1164, 1
    %v1166 = vadd.f32 %v1164, %v1165
    %v1167 = vsel %vm1001, %v1148, 0.0
    %v1168 = vadd.f32 %v1143, %v1167
    %v1169 = vrot.slane %v1168, 4
    %v1170 = vadd.f32 %v1168, %v1169
    %v1171 = vrot.slane %v1170, 2
    %v1172 = vadd.f32 %v1170, %v1171
    %v1173 = vrot.slane %v1172, 1
    %v1174 = vadd.f32 %v1172, %v1173
    %v1175 = vsel %vm1001, %v1149, 0.0
    %v1176 = vadd.f32 %v1144, %v1175
    %v1177 = vrot.slane %v1176, 4
    %v1178 = vadd.f32 %v1176, %v1177
    %v1179 = vrot.slane %v1178, 2
    %v1180 = vadd.f32 %v1178, %v1179
    %v1181 = vrot.slane %v1180, 1
    %v1182 = vadd.f32 %v1180, %v1181
    %v1183 = vsel %vm1001, %v1150, 0.0
    %v1184 = vadd.f32 %v1145, %v1183
    %v1185 = vrot.slane %v1184, 4
    %v1186 = vadd.f32 %v1184, %v1185
    %v1187 = vrot.slane %v1186, 2
    %v1188 = vadd.f32 %v1186, %v1187
    %v1189 = vrot.slane %v1188, 1
    %v1190 = vadd.f32 %v1188, %v1189
    %v1191 = vperm.slane %v1122, 0
    %v1192 = vperm.slane %v1122, 1
    %v1193 = vperm.slane %v1122, 2
    %v1194 = vperm.slane %v1122, 3
    %v1195 = vperm.slane %v1122, 4
    %vm1196 = vcmp.eq.s32.totalorder %v1124, %v1191
    %vm1197 = vcmp.eq.s32.totalorder %v1124, %v1192
    %vm1198 = vcmp.eq.s32.totalorder %v1124, %v1193
    %vm1199 = vcmp.eq.s32.totalorder %v1124, %v1194
    %vm1200 = vcmp.eq.s32.totalorder %v1124, %v1195
    %vm1201 = vcmp.eq.s32.totalorder %v1125, %v1191
    %vm1202 = vcmp.eq.s32.totalorder %v1125, %v1192
    %vm1203 = vcmp.eq.s32.totalorder %v1125, %v1193
    %vm1204 = vcmp.eq.s32.totalorder %v1125, %v1194
    %vm1205 = vcmp.eq.s32.totalorder %v1125, %v1195
    %v1206 = vsel %vm1196, %v1053, 0.0
    %v1207 = vsel %vm1197, %v1055, 0.0
    %v1208 = vsel %vm1198, %v1057, 0.0
    %v1209 = vsel %vm1199, %v1059, 0.0
    %v1210 = vsel %vm1200, %v1061, 0.0
    %v1211 = vsel %vm1201, %v1063, 0.0
    %v1212 = vsel %vm1202, %v1065, 0.0
    %v1213 = vsel %vm1203, %v1067, 0.0
    %v1214 = vsel %vm1204, %v1069, 0.0
    %v1215 = vsel %vm1205, %v1071, 0.0
    %v1216 = vsel %vm1001, %v1211, 0.0
    %v1217 = vadd.f32 %v1206, %v1216
    %v1218 = vrot.slane %v1217, 4
    %v1219 = vadd.f32 %v1217, %v1218
    %v1220 = vrot.slane %v1219, 2
    %v1221 = vadd.f32 %v1219, %v1220
    %v1222 = vrot.slane %v1221, 1
    %v1223 = vadd.f32 %v1221, %v1222
    %v1224 = vsel %vm1001, %v1212, 0.0
    %v1225 = vadd.f32 %v1207, %v1224
    %v1226 = vrot.slane %v1225, 4
    %v1227 = vadd.f32 %v1225, %v1226
    %v1228 = vrot.slane %v1227, 2
    %v1229 = vadd.f32 %v1227, %v1228
    %v1230 = vrot.slane %v1229, 1
    %v1231 = vadd.f32 %v1229, %v1230
    %v1232 = vsel %vm1001, %v1213, 0.0
    %v1233 = vadd.f32 %v1208, %v1232
    %v1234 = vrot.slane %v1233, 4
    %v1235 = vadd.f32 %v1233, %v1234
    %v1236 = vrot.slane %v1235, 2
    %v1237 = vadd.f32 %v1235, %v1236
    %v1238 = vrot.slane %v1237, 1
    %v1239 = vadd.f32 %v1237, %v1238
    %v1240 = vsel %vm1001, %v1214, 0.0
    %v1241 = vadd.f32 %v1209, %v1240
    %v1242 = vrot.slane %v1241, 4
    %v1243 = vadd.f32 %v1241, %v1242
    %v1244 = vrot.slane %v1243, 2
    %v1245 = vadd.f32 %v1243, %v1244
    %v1246 = vrot.slane %v1245, 1
    %v1247 = vadd.f32 %v1245, %v1246
    %v1248 = vsel %vm1001, %v1215, 0.0
    %v1249 = vadd.f32 %v1210, %v1248
    %v1250 = vrot.slane %v1249, 4
    %v1251 = vadd.f32 %v1249, %v1250
    %v1252 = vrot.slane %v1251, 2
    %v1253 = vadd.f32 %v1251, %v1252
    %v1254 = vrot.slane %v1253, 1
    %v1255 = vadd.f32 %v1253, %v1254
    %v1256 = vrcp.pop %v1079
    %v1257 = vrcp.pop %v1087
    %v1258 = vrcp.pop %v1095
    %v1259 = vrcp.pop %v1103
    %v1260 = vrcp.pop %v1111
    %v1261 = vmul.f32 %v1079, %v1256
    %v1262 = vmul.f32 %v1087, %v1257
    %v1263 = vmul.f32 %v1095, %v1258
    %v1264 = vmul.f32 %v1103, %v1259
    %v1265 = vmul.f32 %v1111, %v1260
    %v1266 = vsub.f32 2.0, %v1261
    %v1267 = vsub.f32 2.0, %v1262
    %v1268 = vsub.f32 2.0, %v1263
    %v1269 = vsub.f32 2.0, %v1264
    %v1270 = vsub.f32 2.0, %v1265
    %v1271 = vmul.f32 %v1256, %v1266
    %v1272 = vmul.f32 %v1257, %v1267
    %v1273 = vmul.f32 %v1258, %v1268
    %v1274 = vmul.f32 %v1259, %v1269
    %v1275 = vmul.f32 %v1260, %v1270
    %v1276 = vsub.f32 %v1223, %v1158
    %v1277 = vsub.f32 %v1231, %v1166
    %v1278 = vsub.f32 %v1239, %v1174
    %v1279 = vsub.f32 %v1247, %v1182
    %v1280 = vsub.f32 %v1255, %v1190
    %v1282 = vperm.slane %v1115, 0
    %v1283 = vperm.slane %v1115, 1
    %v1284 = vperm.slane %v1115, 2
    %v1285 = vperm.slane %v1115, 3
    %v1286 = vperm.slane %v1115, 4
    %v1292 = vmul.f32 %v1276, %v1282
    %v1293 = vmul.f32 %v1277, %v1283
    %v1294 = vmul.f32 %v1278, %v1284
    %v1295 = vmul.f32 %v1279, %v1285
    %v1296 = vmul.f32 %v1280, %v1286
    %v1297 = vadd.f32 %v1158, %v1292
    %v1298 = vadd.f32 %v1166, %v1293
    %v1299 = vadd.f32 %v1174, %v1294
    %v1300 = vadd.f32 %v1182, %v1295
    %v1301 = vadd.f32 %v1190, %v1296
    %v1302 = vmul.f32 %v1297, %v1271
    %v1303 = vmul.f32 %v1298, %v1272
    %v1304 = vmul.f32 %v1299, %v1273
    %v1305 = vmul.f32 %v1300, %v1274
    %v1306 = vmul.f32 %v1301, %v1275
    %v1312 = vrot.slane %v1303, 7
    %v1313 = vrot.slane %v1304, 6
    %v1314 = vrot.slane %v1305, 5
    %v1315 = vrot.slane %v1306, 4
    %vm1316 = vcmask 1040384
    %v1317 = vsel %vm1316, %v1302, %v1312
    %vm1318 = vcmask 1041408
    %v1319 = vsel %vm1318, %v1317, %v1313
    %vm1320 = vcmask 1043459
    %v1321 = vsel %vm1320, %v1314, %v1315
    %v1322 = vsel %vm1001, %v1319, %v1321
    %v1324 = vlaneseq
    %vm1325 = vcmp.ge.s32.totalorder %v1324, 0
    %vm1326 = vcmp.lt.s32.totalorder %v1324, 640
    %vm1327 = vmand %vm1325, %vm1326
    %1328 = vst.msk [vmem:[#allocation2] sm:$0x1f] %vm1327, %v1322
    %v1329 = vmul.f32 %v47, %v47
    %v1330 = vsub.f32 %v47, 0.33
    %v1331 = vmax.f32 %v1330, 0.0
    %v1332 = vmul.f32 %v1331, %v1331
    %v1333 = vsub.f32 %v47, 0.66
    %v1334 = vmax.f32 %v1333, 0.0
    %v1335 = vmul.f32 %v1334, %v1334
    %v1336 = vld [vmem:[%s8] sm:$0xff]
    %v1337 = vld [vmem:[%s8 + $0x8] sm:$0xff]
    %v1338 = vld [vmem:[%s8 + $0x10] sm:$0xff]
    %v1339 = vld [vmem:[%s8 + $0x18] sm:$0xff]
    %v1340 = vld [vmem:[%s8 + $0x20] sm:$0xff]
    %v1341 = vld [vmem:[%s8 + $0x28] sm:$0xff]
    %v1342 = vld [vmem:[%s8 + $0x30] sm:$0xff]
    %v1343 = vld [vmem:[%s8 + $0x38] sm:$0xff]
    %v1344 = vld [vmem:[%s8 + $0x40] sm:$0xff]
    %v1345 = vld [vmem:[%s8 + $0x48] sm:$0xff]
    %v1346 = vld [vmem:[%s8 + $0x50] sm:$0xff]
    %v1347 = vld [vmem:[%s8 + $0x58] sm:$0xff]
    %v1348 = vld [vmem:[%s8 + $0x60] sm:$0xff]
    %v1349 = vld [vmem:[%s8 + $0x68] sm:$0xff]
    %v1350 = vld [vmem:[%s8 + $0x70] sm:$0xff]
    %v1351 = vld [vmem:[%s8 + $0x78] sm:$0xff]
    %v1352 = vld [vmem:[%s8 + $0x80] sm:$0xff]
    %v1353 = vld [vmem:[%s8 + $0x88] sm:$0xff]
    %v1354 = vld [vmem:[%s8 + $0x90] sm:$0xff]
    %v1355 = vld [vmem:[%s8 + $0x98] sm:$0xff]
    %1357 = vset.pattern.permute.xlu0 0
    %1358 = vperm.xlu0 %1357, %v1336
    %v1359 = vpop.permute.xlu0 %1358
    %1362 = vset.pattern.permute.xlu0 0
    %1363 = vperm.xlu0 %1362, %v1337
    %v1364 = vpop.permute.xlu0 %1363
    %1367 = vset.pattern.permute.xlu0 0
    %1368 = vperm.xlu0 %1367, %v1338
    %v1369 = vpop.permute.xlu0 %1368
    %1372 = vset.pattern.permute.xlu0 0
    %1373 = vperm.xlu0 %1372, %v1339
    %v1374 = vpop.permute.xlu0 %1373
    %1377 = vset.pattern.permute.xlu0 0
    %1378 = vperm.xlu0 %1377, %v1340
    %v1379 = vpop.permute.xlu0 %1378
    %1382 = vset.pattern.permute.xlu0 0
    %1383 = vperm.xlu0 %1382, %v1341
    %v1384 = vpop.permute.xlu0 %1383
    %1387 = vset.pattern.permute.xlu0 0
    %1388 = vperm.xlu0 %1387, %v1342
    %v1389 = vpop.permute.xlu0 %1388
    %1392 = vset.pattern.permute.xlu0 0
    %1393 = vperm.xlu0 %1392, %v1343
    %v1394 = vpop.permute.xlu0 %1393
    %1397 = vset.pattern.permute.xlu0 0
    %1398 = vperm.xlu0 %1397, %v1344
    %v1399 = vpop.permute.xlu0 %1398
    %1402 = vset.pattern.permute.xlu0 0
    %1403 = vperm.xlu0 %1402, %v1345
    %v1404 = vpop.permute.xlu0 %1403
    %1407 = vset.pattern.permute.xlu0 0
    %1408 = vperm.xlu0 %1407, %v1346
    %v1409 = vpop.permute.xlu0 %1408
    %1412 = vset.pattern.permute.xlu0 0
    %1413 = vperm.xlu0 %1412, %v1347
    %v1414 = vpop.permute.xlu0 %1413
    %1417 = vset.pattern.permute.xlu0 0
    %1418 = vperm.xlu0 %1417, %v1348
    %v1419 = vpop.permute.xlu0 %1418
    %1422 = vset.pattern.permute.xlu0 0
    %1423 = vperm.xlu0 %1422, %v1349
    %v1424 = vpop.permute.xlu0 %1423
    %1427 = vset.pattern.permute.xlu0 0
    %1428 = vperm.xlu0 %1427, %v1350
    %v1429 = vpop.permute.xlu0 %1428
    %1432 = vset.pattern.permute.xlu0 0
    %1433 = vperm.xlu0 %1432, %v1351
    %v1434 = vpop.permute.xlu0 %1433
    %1437 = vset.pattern.permute.xlu0 0
    %1438 = vperm.xlu0 %1437, %v1352
    %v1439 = vpop.permute.xlu0 %1438
    %1442 = vset.pattern.permute.xlu0 0
    %1443 = vperm.xlu0 %1442, %v1353
    %v1444 = vpop.permute.xlu0 %1443
    %1447 = vset.pattern.permute.xlu0 0
    %1448 = vperm.xlu0 %1447, %v1354
    %v1449 = vpop.permute.xlu0 %1448
    %1452 = vset.pattern.permute.xlu0 0
    %1453 = vperm.xlu0 %1452, %v1355
    %v1454 = vpop.permute.xlu0 %1453
    %v1456 = vadd.f32 %v582, %v1359
    %v1457 = vadd.f32 %v665, %v1359
    %v1458 = vadd.f32 %v748, %v1359
    %v1459 = vadd.f32 %v831, %v1359
    %v1460 = vadd.f32 %v914, %v1359
    %v1461 = vadd.f32 %v585, %v1364
    %v1462 = vadd.f32 %v668, %v1364
    %v1463 = vadd.f32 %v751, %v1364
    %v1464 = vadd.f32 %v834, %v1364
    %v1465 = vadd.f32 %v917, %v1364
    %v1466 = vadd.f32 %v588, %v1369
    %v1467 = vadd.f32 %v671, %v1369
    %v1468 = vadd.f32 %v754, %v1369
    %v1469 = vadd.f32 %v837, %v1369
    %v1470 = vadd.f32 %v920, %v1369
    %v1471 = vadd.f32 %v591, %v1374
    %v1472 = vadd.f32 %v674, %v1374
    %v1473 = vadd.f32 %v757, %v1374
    %v1474 = vadd.f32 %v840, %v1374
    %v1475 = vadd.f32 %v923, %v1374
    %v1476 = vadd.f32 %v594, %v1379
    %v1477 = vadd.f32 %v677, %v1379
    %v1478 = vadd.f32 %v760, %v1379
    %v1479 = vadd.f32 %v843, %v1379
    %v1480 = vadd.f32 %v926, %v1379
    %v1481 = vadd.f32 %v597, %v1384
    %v1482 = vadd.f32 %v680, %v1384
    %v1483 = vadd.f32 %v763, %v1384
    %v1484 = vadd.f32 %v846, %v1384
    %v1485 = vadd.f32 %v929, %v1384
    %v1486 = vadd.f32 %v600, %v1389
    %v1487 = vadd.f32 %v683, %v1389
    %v1488 = vadd.f32 %v766, %v1389
    %v1489 = vadd.f32 %v849, %v1389
    %v1490 = vadd.f32 %v932, %v1389
    %v1491 = vadd.f32 %v603, %v1394
    %v1492 = vadd.f32 %v686, %v1394
    %v1493 = vadd.f32 %v769, %v1394
    %v1494 = vadd.f32 %v852, %v1394
    %v1495 = vadd.f32 %v935, %v1394
    %v1496 = vadd.f32 %v606, %v1399
    %v1497 = vadd.f32 %v689, %v1399
    %v1498 = vadd.f32 %v772, %v1399
    %v1499 = vadd.f32 %v855, %v1399
    %v1500 = vadd.f32 %v938, %v1399
    %v1501 = vadd.f32 %v609, %v1404
    %v1502 = vadd.f32 %v692, %v1404
    %v1503 = vadd.f32 %v775, %v1404
    %v1504 = vadd.f32 %v858, %v1404
    %v1505 = vadd.f32 %v941, %v1404
    %v1506 = vadd.f32 %v612, %v1409
    %v1507 = vadd.f32 %v695, %v1409
    %v1508 = vadd.f32 %v778, %v1409
    %v1509 = vadd.f32 %v861, %v1409
    %v1510 = vadd.f32 %v944, %v1409
    %v1511 = vadd.f32 %v615, %v1414
    %v1512 = vadd.f32 %v698, %v1414
    %v1513 = vadd.f32 %v781, %v1414
    %v1514 = vadd.f32 %v864, %v1414
    %v1515 = vadd.f32 %v947, %v1414
    %v1516 = vadd.f32 %v618, %v1419
    %v1517 = vadd.f32 %v701, %v1419
    %v1518 = vadd.f32 %v784, %v1419
    %v1519 = vadd.f32 %v867, %v1419
    %v1520 = vadd.f32 %v950, %v1419
    %v1521 = vadd.f32 %v621, %v1424
    %v1522 = vadd.f32 %v704, %v1424
    %v1523 = vadd.f32 %v787, %v1424
    %v1524 = vadd.f32 %v870, %v1424
    %v1525 = vadd.f32 %v953, %v1424
    %v1526 = vadd.f32 %v624, %v1429
    %v1527 = vadd.f32 %v707, %v1429
    %v1528 = vadd.f32 %v790, %v1429
    %v1529 = vadd.f32 %v873, %v1429
    %v1530 = vadd.f32 %v956, %v1429
    %v1531 = vadd.f32 %v627, %v1434
    %v1532 = vadd.f32 %v710, %v1434
    %v1533 = vadd.f32 %v793, %v1434
    %v1534 = vadd.f32 %v876, %v1434
    %v1535 = vadd.f32 %v959, %v1434
    %v1536 = vadd.f32 %v630, %v1439
    %v1537 = vadd.f32 %v713, %v1439
    %v1538 = vadd.f32 %v796, %v1439
    %v1539 = vadd.f32 %v879, %v1439
    %v1540 = vadd.f32 %v962, %v1439
    %v1541 = vadd.f32 %v633, %v1444
    %v1542 = vadd.f32 %v716, %v1444
    %v1543 = vadd.f32 %v799, %v1444
    %v1544 = vadd.f32 %v882, %v1444
    %v1545 = vadd.f32 %v965, %v1444
    %v1546 = vadd.f32 %v636, %v1449
    %v1547 = vadd.f32 %v719, %v1449
    %v1548 = vadd.f32 %v802, %v1449
    %v1549 = vadd.f32 %v885, %v1449
    %v1550 = vadd.f32 %v968, %v1449
    %v1551 = vadd.f32 %v639, %v1454
    %v1552 = vadd.f32 %v722, %v1454
    %v1553 = vadd.f32 %v805, %v1454
    %v1554 = vadd.f32 %v888, %v1454
    %v1555 = vadd.f32 %v971, %v1454
    %v1557 = vperm.slane %v47, 0
    %v1558 = vperm.slane %v47, 1
    %v1559 = vperm.slane %v47, 2
    %v1560 = vperm.slane %v47, 3
    %v1561 = vperm.slane %v47, 4
    %v1567 = vmul.f32 %v1476, %v1557
    %v1568 = vmul.f32 %v1477, %v1558
    %v1569 = vmul.f32 %v1478, %v1559
    %v1570 = vmul.f32 %v1479, %v1560
    %v1571 = vmul.f32 %v1480, %v1561
    %v1572 = vmul.f32 %v1481, %v1557
    %v1573 = vmul.f32 %v1482, %v1558
    %v1574 = vmul.f32 %v1483, %v1559
    %v1575 = vmul.f32 %v1484, %v1560
    %v1576 = vmul.f32 %v1485, %v1561
    %v1577 = vmul.f32 %v1486, %v1557
    %v1578 = vmul.f32 %v1487, %v1558
    %v1579 = vmul.f32 %v1488, %v1559
    %v1580 = vmul.f32 %v1489, %v1560
    %v1581 = vmul.f32 %v1490, %v1561
    %v1582 = vmul.f32 %v1491, %v1557
    %v1583 = vmul.f32 %v1492, %v1558
    %v1584 = vmul.f32 %v1493, %v1559
    %v1585 = vmul.f32 %v1494, %v1560
    %v1586 = vmul.f32 %v1495, %v1561
    %v1587 = vadd.f32 %v1456, %v1567
    %v1588 = vadd.f32 %v1457, %v1568
    %v1589 = vadd.f32 %v1458, %v1569
    %v1590 = vadd.f32 %v1459, %v1570
    %v1591 = vadd.f32 %v1460, %v1571
    %v1592 = vadd.f32 %v1461, %v1572
    %v1593 = vadd.f32 %v1462, %v1573
    %v1594 = vadd.f32 %v1463, %v1574
    %v1595 = vadd.f32 %v1464, %v1575
    %v1596 = vadd.f32 %v1465, %v1576
    %v1597 = vadd.f32 %v1466, %v1577
    %v1598 = vadd.f32 %v1467, %v1578
    %v1599 = vadd.f32 %v1468, %v1579
    %v1600 = vadd.f32 %v1469, %v1580
    %v1601 = vadd.f32 %v1470, %v1581
    %v1602 = vadd.f32 %v1471, %v1582
    %v1603 = vadd.f32 %v1472, %v1583
    %v1604 = vadd.f32 %v1473, %v1584
    %v1605 = vadd.f32 %v1474, %v1585
    %v1606 = vadd.f32 %v1475, %v1586
    %v1608 = vperm.slane %v1329, 0
    %v1609 = vperm.slane %v1329, 1
    %v1610 = vperm.slane %v1329, 2
    %v1611 = vperm.slane %v1329, 3
    %v1612 = vperm.slane %v1329, 4
    %v1618 = vmul.f32 %v1496, %v1608
    %v1619 = vmul.f32 %v1497, %v1609
    %v1620 = vmul.f32 %v1498, %v1610
    %v1621 = vmul.f32 %v1499, %v1611
    %v1622 = vmul.f32 %v1500, %v1612
    %v1623 = vmul.f32 %v1501, %v1608
    %v1624 = vmul.f32 %v1502, %v1609
    %v1625 = vmul.f32 %v1503, %v1610
    %v1626 = vmul.f32 %v1504, %v1611
    %v1627 = vmul.f32 %v1505, %v1612
    %v1628 = vmul.f32 %v1506, %v1608
    %v1629 = vmul.f32 %v1507, %v1609
    %v1630 = vmul.f32 %v1508, %v1610
    %v1631 = vmul.f32 %v1509, %v1611
    %v1632 = vmul.f32 %v1510, %v1612
    %v1633 = vmul.f32 %v1511, %v1608
    %v1634 = vmul.f32 %v1512, %v1609
    %v1635 = vmul.f32 %v1513, %v1610
    %v1636 = vmul.f32 %v1514, %v1611
    %v1637 = vmul.f32 %v1515, %v1612
    %v1638 = vadd.f32 %v1587, %v1618
    %v1639 = vadd.f32 %v1588, %v1619
    %v1640 = vadd.f32 %v1589, %v1620
    %v1641 = vadd.f32 %v1590, %v1621
    %v1642 = vadd.f32 %v1591, %v1622
    %v1643 = vadd.f32 %v1592, %v1623
    %v1644 = vadd.f32 %v1593, %v1624
    %v1645 = vadd.f32 %v1594, %v1625
    %v1646 = vadd.f32 %v1595, %v1626
    %v1647 = vadd.f32 %v1596, %v1627
    %v1648 = vadd.f32 %v1597, %v1628
    %v1649 = vadd.f32 %v1598, %v1629
    %v1650 = vadd.f32 %v1599, %v1630
    %v1651 = vadd.f32 %v1600, %v1631
    %v1652 = vadd.f32 %v1601, %v1632
    %v1653 = vadd.f32 %v1602, %v1633
    %v1654 = vadd.f32 %v1603, %v1634
    %v1655 = vadd.f32 %v1604, %v1635
    %v1656 = vadd.f32 %v1605, %v1636
    %v1657 = vadd.f32 %v1606, %v1637
    %v1659 = vperm.slane %v1332, 0
    %v1660 = vperm.slane %v1332, 1
    %v1661 = vperm.slane %v1332, 2
    %v1662 = vperm.slane %v1332, 3
    %v1663 = vperm.slane %v1332, 4
    %v1669 = vmul.f32 %v1516, %v1659
    %v1670 = vmul.f32 %v1517, %v1660
    %v1671 = vmul.f32 %v1518, %v1661
    %v1672 = vmul.f32 %v1519, %v1662
    %v1673 = vmul.f32 %v1520, %v1663
    %v1674 = vmul.f32 %v1521, %v1659
    %v1675 = vmul.f32 %v1522, %v1660
    %v1676 = vmul.f32 %v1523, %v1661
    %v1677 = vmul.f32 %v1524, %v1662
    %v1678 = vmul.f32 %v1525, %v1663
    %v1679 = vmul.f32 %v1526, %v1659
    %v1680 = vmul.f32 %v1527, %v1660
    %v1681 = vmul.f32 %v1528, %v1661
    %v1682 = vmul.f32 %v1529, %v1662
    %v1683 = vmul.f32 %v1530, %v1663
    %v1684 = vmul.f32 %v1531, %v1659
    %v1685 = vmul.f32 %v1532, %v1660
    %v1686 = vmul.f32 %v1533, %v1661
    %v1687 = vmul.f32 %v1534, %v1662
    %v1688 = vmul.f32 %v1535, %v1663
    %v1689 = vadd.f32 %v1638, %v1669
    %v1690 = vadd.f32 %v1639, %v1670
    %v1691 = vadd.f32 %v1640, %v1671
    %v1692 = vadd.f32 %v1641, %v1672
    %v1693 = vadd.f32 %v1642, %v1673
    %v1694 = vadd.f32 %v1643, %v1674
    %v1695 = vadd.f32 %v1644, %v1675
    %v1696 = vadd.f32 %v1645, %v1676
    %v1697 = vadd.f32 %v1646, %v1677
    %v1698 = vadd.f32 %v1647, %v1678
    %v1699 = vadd.f32 %v1648, %v1679
    %v1700 = vadd.f32 %v1649, %v1680
    %v1701 = vadd.f32 %v1650, %v1681
    %v1702 = vadd.f32 %v1651, %v1682
    %v1703 = vadd.f32 %v1652, %v1683
    %v1704 = vadd.f32 %v1653, %v1684
    %v1705 = vadd.f32 %v1654, %v1685
    %v1706 = vadd.f32 %v1655, %v1686
    %v1707 = vadd.f32 %v1656, %v1687
    %v1708 = vadd.f32 %v1657, %v1688
    %v1710 = vperm.slane %v1335, 0
    %v1711 = vperm.slane %v1335, 1
    %v1712 = vperm.slane %v1335, 2
    %v1713 = vperm.slane %v1335, 3
    %v1714 = vperm.slane %v1335, 4
    %v1720 = vmul.f32 %v1536, %v1710
    %v1721 = vmul.f32 %v1537, %v1711
    %v1722 = vmul.f32 %v1538, %v1712
    %v1723 = vmul.f32 %v1539, %v1713
    %v1724 = vmul.f32 %v1540, %v1714
    %v1725 = vmul.f32 %v1541, %v1710
    %v1726 = vmul.f32 %v1542, %v1711
    %v1727 = vmul.f32 %v1543, %v1712
    %v1728 = vmul.f32 %v1544, %v1713
    %v1729 = vmul.f32 %v1545, %v1714
    %v1730 = vmul.f32 %v1546, %v1710
    %v1731 = vmul.f32 %v1547, %v1711
    %v1732 = vmul.f32 %v1548, %v1712
    %v1733 = vmul.f32 %v1549, %v1713
    %v1734 = vmul.f32 %v1550, %v1714
    %v1735 = vmul.f32 %v1551, %v1710
    %v1736 = vmul.f32 %v1552, %v1711
    %v1737 = vmul.f32 %v1553, %v1712
    %v1738 = vmul.f32 %v1554, %v1713
    %v1739 = vmul.f32 %v1555, %v1714
    %v1740 = vadd.f32 %v1689, %v1720
    %v1741 = vadd.f32 %v1690, %v1721
    %v1742 = vadd.f32 %v1691, %v1722
    %v1743 = vadd.f32 %v1692, %v1723
    %v1744 = vadd.f32 %v1693, %v1724
    %v1745 = vadd.f32 %v1694, %v1725
    %v1746 = vadd.f32 %v1695, %v1726
    %v1747 = vadd.f32 %v1696, %v1727
    %v1748 = vadd.f32 %v1697, %v1728
    %v1749 = vadd.f32 %v1698, %v1729
    %v1750 = vadd.f32 %v1699, %v1730
    %v1751 = vadd.f32 %v1700, %v1731
    %v1752 = vadd.f32 %v1701, %v1732
    %v1753 = vadd.f32 %v1702, %v1733
    %v1754 = vadd.f32 %v1703, %v1734
    %v1755 = vadd.f32 %v1704, %v1735
    %v1756 = vadd.f32 %v1705, %v1736
    %v1757 = vadd.f32 %v1706, %v1737
    %v1758 = vadd.f32 %v1707, %v1738
    %v1759 = vadd.f32 %v1708, %v1739
    %v1760 = vmax.f32 %v1740, 0.0
    %v1761 = vmax.f32 %v1741, 0.0
    %v1762 = vmax.f32 %v1742, 0.0
    %v1763 = vmax.f32 %v1743, 0.0
    %v1764 = vmax.f32 %v1744, 0.0
    %v1765 = vmax.f32 %v1745, 0.0
    %v1766 = vmax.f32 %v1746, 0.0
    %v1767 = vmax.f32 %v1747, 0.0
    %v1768 = vmax.f32 %v1748, 0.0
    %v1769 = vmax.f32 %v1749, 0.0
    %v1770 = vmax.f32 %v1750, 0.0
    %v1771 = vmax.f32 %v1751, 0.0
    %v1772 = vmax.f32 %v1752, 0.0
    %v1773 = vmax.f32 %v1753, 0.0
    %v1774 = vmax.f32 %v1754, 0.0
    %v1775 = vmax.f32 %v1755, 0.0
    %v1776 = vmax.f32 %v1756, 0.0
    %v1777 = vmax.f32 %v1757, 0.0
    %v1778 = vmax.f32 %v1758, 0.0
    %v1779 = vmax.f32 %v1759, 0.0
    %v1780 = vld [vmem:[%s9] sm:$0x1f]
    %v1781 = vld [vmem:[%s10] sm:$0x1f]
    %1783 = vset.pattern.permute.xlu0 0
    %1784 = vperm.xlu0 %1783, %v1781
    %v1785 = vpop.permute.xlu0 %1784
    %v1788 = vsel %vm298, %v1780, 0
    %1790 = vmatpush.msra.mxu0 0.0
    %1791 = vmatpush.msra.mxu0 0.0
    %1792 = vmatpush.msra.mxu0 0.0
    %1793 = vmatpush.msra.mxu0 0.0
    %1794 = vmatpush.msra.mxu0 0.0
    %1795 = vmatpush.msra.mxu0 0.0
    %1796 = vmatpush.msra.mxu0 0.0
    %1797 = vmatpush.msra.mxu0 0.0
    %1798 = vmatpush.msra.mxu0 0.0
    %1799 = vmatpush.msra.mxu0 0.0
    %1800 = vmatpush.msra.mxu0 0.0
    %1801 = vmatpush.msra.mxu0 0.0
    %1802 = vmatpush.msra.mxu0 %v1775
    %1803 = vmatpush.msra.mxu0 %v1770
    %1804 = vmatpush.msra.mxu0 %v1765
    %1805 = vmatpush.msra.mxu0 %v1760
    %1806 = vmatmul.f32.gmra.mxu0 %v1788
    %v1807 = vpop.f32.mrf.mxu0
    %v1808 = vadd.f32 %v1785, %v1807
    %1809 = vdwg.mxu0
    %1810 = vmatpush.msra.mxu0 0.0
    %1811 = vmatpush.msra.mxu0 0.0
    %1812 = vmatpush.msra.mxu0 0.0
    %1813 = vmatpush.msra.mxu0 0.0
    %1814 = vmatpush.msra.mxu0 0.0
    %1815 = vmatpush.msra.mxu0 0.0
    %1816 = vmatpush.msra.mxu0 0.0
    %1817 = vmatpush.msra.mxu0 0.0
    %1818 = vmatpush.msra.mxu0 0.0
    %1819 = vmatpush.msra.mxu0 0.0
    %1820 = vmatpush.msra.mxu0 0.0
    %1821 = vmatpush.msra.mxu0 0.0
    %1822 = vmatpush.msra.mxu0 %v1776
    %1823 = vmatpush.msra.mxu0 %v1771
    %1824 = vmatpush.msra.mxu0 %v1766
    %1825 = vmatpush.msra.mxu0 %v1761
    %1826 = vmatmul.f32.gmra.mxu0 %v1788
    %v1827 = vpop.f32.mrf.mxu0
    %v1828 = vadd.f32 %v1785, %v1827
    %1829 = vdwg.mxu0
    %1830 = vmatpush.msra.mxu0 0.0
    %1831 = vmatpush.msra.mxu0 0.0
    %1832 = vmatpush.msra.mxu0 0.0
    %1833 = vmatpush.msra.mxu0 0.0
    %1834 = vmatpush.msra.mxu0 0.0
    %1835 = vmatpush.msra.mxu0 0.0
    %1836 = vmatpush.msra.mxu0 0.0
    %1837 = vmatpush.msra.mxu0 0.0
    %1838 = vmatpush.msra.mxu0 0.0
    %1839 = vmatpush.msra.mxu0 0.0
    %1840 = vmatpush.msra.mxu0 0.0
    %1841 = vmatpush.msra.mxu0 0.0
    %1842 = vmatpush.msra.mxu0 %v1777
    %1843 = vmatpush.msra.mxu0 %v1772
    %1844 = vmatpush.msra.mxu0 %v1767
    %1845 = vmatpush.msra.mxu0 %v1762
    %1846 = vmatmul.f32.gmra.mxu0 %v1788
    %v1847 = vpop.f32.mrf.mxu0
    %v1848 = vadd.f32 %v1785, %v1847
    %1849 = vdwg.mxu0
    %1850 = vmatpush.msra.mxu0 0.0
    %1851 = vmatpush.msra.mxu0 0.0
    %1852 = vmatpush.msra.mxu0 0.0
    %1853 = vmatpush.msra.mxu0 0.0
    %1854 = vmatpush.msra.mxu0 0.0
    %1855 = vmatpush.msra.mxu0 0.0
    %1856 = vmatpush.msra.mxu0 0.0
    %1857 = vmatpush.msra.mxu0 0.0
    %1858 = vmatpush.msra.mxu0 0.0
    %1859 = vmatpush.msra.mxu0 0.0
    %1860 = vmatpush.msra.mxu0 0.0
    %1861 = vmatpush.msra.mxu0 0.0
    %1862 = vmatpush.msra.mxu0 %v1778
    %1863 = vmatpush.msra.mxu0 %v1773
    %1864 = vmatpush.msra.mxu0 %v1768
    %1865 = vmatpush.msra.mxu0 %v1763
    %1866 = vmatmul.f32.gmra.mxu0 %v1788
    %v1867 = vpop.f32.mrf.mxu0
    %v1868 = vadd.f32 %v1785, %v1867
    %1869 = vdwg.mxu0
    %1870 = vmatpush.msra.mxu0 0.0
    %1871 = vmatpush.msra.mxu0 0.0
    %1872 = vmatpush.msra.mxu0 0.0
    %1873 = vmatpush.msra.mxu0 0.0
    %1874 = vmatpush.msra.mxu0 0.0
    %1875 = vmatpush.msra.mxu0 0.0
    %1876 = vmatpush.msra.mxu0 0.0
    %1877 = vmatpush.msra.mxu0 0.0
    %1878 = vmatpush.msra.mxu0 0.0
    %1879 = vmatpush.msra.mxu0 0.0
    %1880 = vmatpush.msra.mxu0 0.0
    %1881 = vmatpush.msra.mxu0 0.0
    %1882 = vmatpush.msra.mxu0 %v1779
    %1883 = vmatpush.msra.mxu0 %v1774
    %1884 = vmatpush.msra.mxu0 %v1769
    %1885 = vmatpush.msra.mxu0 %v1764
    %1886 = vmatmul.f32.gmra.mxu0 %v1788
    %v1887 = vpop.f32.mrf.mxu0
    %v1888 = vadd.f32 %v1785, %v1887
    %1889 = vdwg.mxu0
    %v1890 = vmul.f32 %v1808, %v1557
    %v1891 = vmul.f32 %v1828, %v1558
    %v1892 = vmul.f32 %v1848, %v1559
    %v1893 = vmul.f32 %v1868, %v1560
    %v1894 = vmul.f32 %v1888, %v1561
    %v1900 = vrot.slane %v1890, 1
    %v1901 = vrot.slane %v1891, 1
    %v1902 = vrot.slane %v1892, 1
    %v1903 = vrot.slane %v1893, 1
    %v1904 = vrot.slane %v1894, 1
    %v1910 = vadd.f32 %v1808, %v1900
    %v1911 = vadd.f32 %v1828, %v1901
    %v1912 = vadd.f32 %v1848, %v1902
    %v1913 = vadd.f32 %v1868, %v1903
    %v1914 = vadd.f32 %v1888, %v1904
    %v1915 = vmul.f32 %v1808, %v1608
    %v1916 = vmul.f32 %v1828, %v1609
    %v1917 = vmul.f32 %v1848, %v1610
    %v1918 = vmul.f32 %v1868, %v1611
    %v1919 = vmul.f32 %v1888, %v1612
    %v1925 = vrot.slane %v1915, 2
    %v1926 = vrot.slane %v1916, 2
    %v1927 = vrot.slane %v1917, 2
    %v1928 = vrot.slane %v1918, 2
    %v1929 = vrot.slane %v1919, 2
    %v1935 = vadd.f32 %v1910, %v1925
    %v1936 = vadd.f32 %v1911, %v1926
    %v1937 = vadd.f32 %v1912, %v1927
    %v1938 = vadd.f32 %v1913, %v1928
    %v1939 = vadd.f32 %v1914, %v1929
    %v1940 = vmul.f32 %v1808, %v1659
    %v1941 = vmul.f32 %v1828, %v1660
    %v1942 = vmul.f32 %v1848, %v1661
    %v1943 = vmul.f32 %v1868, %v1662
    %v1944 = vmul.f32 %v1888, %v1663
    %v1950 = vrot.slane %v1940, 3
    %v1951 = vrot.slane %v1941, 3
    %v1952 = vrot.slane %v1942, 3
    %v1953 = vrot.slane %v1943, 3
    %v1954 = vrot.slane %v1944, 3
    %v1960 = vadd.f32 %v1935, %v1950
    %v1961 = vadd.f32 %v1936, %v1951
    %v1962 = vadd.f32 %v1937, %v1952
    %v1963 = vadd.f32 %v1938, %v1953
    %v1964 = vadd.f32 %v1939, %v1954
    %v1965 = vmul.f32 %v1808, %v1710
    %v1966 = vmul.f32 %v1828, %v1711
    %v1967 = vmul.f32 %v1848, %v1712
    %v1968 = vmul.f32 %v1868, %v1713
    %v1969 = vmul.f32 %v1888, %v1714
    %v1975 = vrot.slane %v1965, 4
    %v1976 = vrot.slane %v1966, 4
    %v1977 = vrot.slane %v1967, 4
    %v1978 = vrot.slane %v1968, 4
    %v1979 = vrot.slane %v1969, 4
    %v1985 = vadd.f32 %v1960, %v1975
    %v1986 = vadd.f32 %v1961, %v1976
    %v1987 = vadd.f32 %v1962, %v1977
    %v1988 = vadd.f32 %v1963, %v1978
    %v1989 = vadd.f32 %v1964, %v1979
    %v1995 = vrot.slane %v1986, 7
    %v1996 = vrot.slane %v1987, 6
    %v1997 = vrot.slane %v1988, 5
    %v1998 = vrot.slane %v1989, 4
    %v1999 = vsel %vm1316, %v1985, %v1995
    %v2000 = vsel %vm1318, %v1999, %v1996
    %v2001 = vsel %vm1320, %v1997, %v1998
    %v2002 = vsel %vm1001, %v2000, %v2001
    %2004 = vst.msk [vmem:[#allocation4] sm:$0x1f] %vm1327, %v2002
    // Predicated region
    $region46: #{tpu_custom_call.1} parent=1 // pred_check
      _
    $region47: #{tpu_custom_call.1} parent=1 // pred_check_branch
      %2006 = sbr.rel (0) target = $region49
    $region48: #{tpu_custom_call.1} parent=1 // pred_region
      %2008 = vsyncadd [#allocation3], 0
      %s2010 = sshll.u32 [#allocation2], 4
      %s2011 = int_to_ptr.vmem [resolvable:$true] %s2010
      %s2012 = sshll.u32 %s11, 4
      %s2013 = int_to_ptr.hbm [resolvable:$true] %s2012
      %2015 = dma.vmem_to_hbm [thread:$0]  %s2011, 80, %s2013, [#allocation3]
    $region49: #{tpu_custom_call.1} parent=1 // pred_fallthru
      _
    // Predicated region
    $region50: #{tpu_custom_call.1} parent=1 // pred_check
      _
    $region51: #{tpu_custom_call.1} parent=1 // pred_check_branch
      %2017 = sbr.rel (0) target = $region53
    $region52: #{tpu_custom_call.1} parent=1 // pred_region
      %2019 = vsyncadd [#allocation5], 0
      %s2021 = sshll.u32 [#allocation4], 4
      %s2022 = int_to_ptr.vmem [resolvable:$true] %s2021
      %s2023 = sshll.u32 %s12, 4
      %s2024 = int_to_ptr.hbm [resolvable:$true] %s2023
      %2026 = dma.vmem_to_hbm [thread:$0]  %s2022, 80, %s2024, [#allocation5]
    $region53: #{tpu_custom_call.1} parent=1 // pred_fallthru
      _
    // Predicated region
    $region54: #{tpu_custom_call.1} parent=1 // pred_check
      _
    $region55: #{tpu_custom_call.1} parent=1 // pred_check_branch
      %2028 = sbr.rel (0) target = $region57
    $region56: #{tpu_custom_call.1} parent=1 // pred_region
      %2030 = dma.done [#allocation3], 80
    $region57: #{tpu_custom_call.1} parent=1 // pred_fallthru
      _
    // Predicated region
    $region58: #{tpu_custom_call.1} parent=1 // pred_check
      _
    $region59: #{tpu_custom_call.1} parent=1 // pred_check_branch
      %2032 = sbr.rel (0) target = $region61
    $region60: #{tpu_custom_call.1} parent=1 // pred_region
      %2034 = dma.done [#allocation5], 80
    $region61: #{tpu_custom_call.1} parent=1 // pred_fallthru
      _
    %2035 = vsyncpa [#allocation3], 1
    %2036 = vsyncpa [#allocation5], 1

</llo_original>
